<compile_context>
chip_gen: v5e
topology: v5e:2x2
jax: 0.10.0
libtpu: 0.0.40
codegen_flags: <defaults>
</compile_context>

<pallas_src>
import numpy as np
import jax
import jax.numpy as jnp
from jax.experimental import pallas as pl
from jax.experimental.pallas import tpu as pltpu

# Body-part joint lists (person 1, then person 2 offset by +25), in the order
# the PyTorch forward concatenates its outputs.
_P1 = [
    [0, 1, 2, 3, 20],          # torso
    [8, 9, 10, 11, 23, 24],    # left hand
    [16, 17, 18, 19],          # left leg
    [4, 5, 6, 7, 21, 22],      # right hand
    [12, 13, 14, 15],          # right leg
]
PART_JOINTS = _P1 + [[j + 25 for j in p] for p in _P1]
PART_WIDTHS = [len(p) for p in PART_JOINTS]
GATHER_IDX = np.concatenate([np.asarray(p, np.int32) for p in PART_JOINTS])
NUM_PARTS = len(PART_JOINTS)          # 10
V_TOTAL = int(sum(PART_WIDTHS))       # 50


def channel_attention_kernel(x_ref, member_ref, avgw_ref, perm_ref,
                             w1_ref, b1_ref, blk_ref, w2_ref, b2_ref, o_ref):
    """One batch element per grid step.

    x_ref    : (1, C, T, 50) input, ORIGINAL joint order
    member   : (10, 50)      0/1 part membership (original joint order)
    avgw     : (10, 50)      member / (T * part_width)   (avg-pool weights)
    perm     : (50, 50)      one-hot permutation: out[..., k] = x[..., idx[k]]
    w1       : (C, 10H)      concatenated fc layer-1 weights
    b1       : (1, 10H)
    blk      : (20, 10H)     block-diagonal selector (rows: 10 avg, 10 max)
    w2       : (10H, C)      concatenated fc layer-2 weights
    b2       : (20, C)
    o_ref    : (1, C*T, 50)  output, body-part-concatenated joint order
    """
    x = x_ref[0].astype(jnp.float32)                       # (C, T, V)
    C, T, V = x.shape
    member = member_ref[...]                               # (P, V)
    P = member.shape[0]

    # ---- pooling over (T, joints-of-part), batched over all 10 parts -------
    sum_t = jnp.sum(x, axis=1)                             # (C, V)
    max_t = jnp.max(x, axis=1)                             # (C, V)
    part_avg = jnp.sum(avgw_ref[...][:, None, :] * sum_t[None, :, :], axis=2)   # (P, C)
    part_max = jnp.max(
        jnp.where(member[:, None, :] > 0.5, max_t[None, :, :], -jnp.inf),
        axis=2)                                            # (P, C)
    pooled = jnp.concatenate([part_avg, part_max], axis=0)  # (2P, C)

    # ---- all 10 per-part MLPs (shared avg/max weights) as 2 plain matmuls ---
    h = jnp.dot(pooled, w1_ref[...], preferred_element_type=jnp.float32) + b1_ref[...]
    h = jnp.maximum(h, 0.0) * blk_ref[...]                 # keep only own part's block
    fc = jnp.dot(h, w2_ref[...], preferred_element_type=jnp.float32) + b2_ref[...]  # (2P, C)
    attn = jax.nn.sigmoid(fc[:P] + fc[P:])                 # (P, C), sigmoid(avg+max)

    # ---- scatter per-part attention to a per-joint (C, V) scale map --------
    scale = jnp.dot(attn.T, member, preferred_element_type=jnp.float32)   # (C, V)

    # ---- full-tile rescale, then permute joints into part order (one MXU op)
    y = x * scale[:, None, :]                              # (C, T, V)
    y2 = y.reshape(C * T, V)
    out = jnp.dot(y2, perm_ref[...], preferred_element_type=jnp.float32)  # (C*T, V)
    o_ref[0] = out.astype(o_ref.dtype)


def _static_tables(T):
    member = np.zeros((NUM_PARTS, V_TOTAL), np.float32)
    for p, joints in enumerate(PART_JOINTS):
        member[p, joints] = 1.0
    avgw = member / (np.asarray(PART_WIDTHS, np.float32)[:, None] * float(T))
    perm = np.zeros((V_TOTAL, V_TOTAL), np.float32)
    perm[GATHER_IDX, np.arange(V_TOTAL)] = 1.0
    return member, avgw, perm


def channel_attention(x, w1, b1, w2, b2):
    """x: (N, C, T, 50) NCHW, original joint order.
       w1,b1,w2,b2: per-part MLP params (10,H,C), (10,H,1), (10,C,H), (10,C,1)
       (Conv2d 1x1 weights squeezed). Returns (N, C, T, 50) in the body-part
       concatenated joint order, matching the PyTorch module's output."""
    N, C, T, V = x.shape
    assert V == V_TOTAL, f"expected V={V_TOTAL}, got {V}"
    P, H, _ = w1.shape

    member_np, avgw_np, perm_np = _static_tables(T)
    member = jnp.asarray(member_np)
    avgw = jnp.asarray(avgw_np)
    perm = jnp.asarray(perm_np)

    f32 = jnp.float32
    # Concatenated / block-structured MLP parameters (tiny, built once per call).
    w1_cat = jnp.transpose(w1.astype(f32), (2, 0, 1)).reshape(C, P * H)   # (C, PH)
    b1_row = b1.astype(f32)[:, :, 0].reshape(1, P * H)                    # (1, PH)
    w2_cat = jnp.transpose(w2.astype(f32), (0, 2, 1)).reshape(P * H, C)   # (PH, C)
    b2_2d = b2.astype(f32)[:, :, 0]                                       # (P, C)
    b2_rows = jnp.concatenate([b2_2d, b2_2d], axis=0)                     # (2P, C)
    blk_np = np.kron(np.eye(P, dtype=np.float32), np.ones((1, H), np.float32))
    blk = jnp.asarray(np.concatenate([blk_np, blk_np], axis=0))           # (2P, PH)

    # VMEM budget: in + out blocks (double-buffered) dominate; lanes pad 50->128.
    block_bytes = C * T * 128 * 4
    vmem_limit = int(min(64 * 2**20, max(16 * 2**20, 8 * block_bytes)))

    out_flat = pl.pallas_call(
        channel_attention_kernel,
        out_shape=jax.ShapeDtypeStruct((N, C * T, V), x.dtype),
        grid_spec=pltpu.PrefetchScalarGridSpec(
            num_scalar_prefetch=0,
            grid=(N,),
            in_specs=[
                pl.BlockSpec((1, C, T, V), lambda n: (n, 0, 0, 0)),   # x
                pl.BlockSpec((P, V), lambda n: (0, 0)),               # member
                pl.BlockSpec((P, V), lambda n: (0, 0)),               # avgw
                pl.BlockSpec((V, V), lambda n: (0, 0)),               # perm
                pl.BlockSpec((C, P * H), lambda n: (0, 0)),           # w1_cat
                pl.BlockSpec((1, P * H), lambda n: (0, 0)),           # b1_row
                pl.BlockSpec((2 * P, P * H), lambda n: (0, 0)),       # blk mask
                pl.BlockSpec((P * H, C), lambda n: (0, 0)),           # w2_cat
                pl.BlockSpec((2 * P, C), lambda n: (0, 0)),           # b2_rows
            ],
            out_specs=pl.BlockSpec((1, C * T, V), lambda n: (n, 0, 0)),
        ),
        compiler_params=pltpu.CompilerParams(
            dimension_semantics=("parallel",),
            vmem_limit_bytes=vmem_limit,
        ),
    )(x, member, avgw, perm, w1_cat, b1_row, blk, w2_cat, b2_rows)
    return out_flat.reshape(N, C, T, V)


def channel_attention_reference(x, w1, b1, w2, b2):
    """Pure-JAX reference reproducing the PyTorch forward."""
    xg = jnp.take(x, jnp.asarray(GATHER_IDX), axis=3)
    offsets = np.concatenate([[0], np.cumsum(PART_WIDTHS)])
    outs = []
    for p in range(NUM_PARTS):
        lo, hi = int(offsets[p]), int(offsets[p + 1])
        part = xg[:, :, :, lo:hi]                  # (N, C, T, w)
        avg = jnp.mean(part, axis=(2, 3))          # (N, C)
        mx = jnp.max(part, axis=(2, 3))            # (N, C)

        def mlp(v, p=p):
            h = jnp.maximum(jnp.einsum("hc,nc->nh", w1[p], v) + b1[p, :, 0][None], 0.0)
            return jnp.einsum("ch,nh->nc", w2[p], h) + b2[p, :, 0][None]

        attn = jax.nn.sigmoid(mlp(avg) + mlp(mx))  # (N, C)
        outs.append(part * attn[:, :, None, None])
    return jnp.concatenate(outs, axis=3)


if __name__ == "__main__":
    # Small but module-consistent shapes: V must be 50 (2 people x 25 joints),
    # in_planes >= 16 so that in_planes // 16 >= 1; T a multiple of 8.
    N, C, T, V = 2, 32, 8, 50
    H = C // 16

    key = jax.random.PRNGKey(0)
    k = jax.random.split(key, 5)
    x = jax.random.normal(k[0], (N, C, T, V), dtype=jnp.float32)
    # Per-part MLP params (Conv2d(C,H,1) weight -> (H,C); Conv2d(H,C,1) -> (C,H)).
    w1 = 0.1 * jax.random.normal(k[1], (NUM_PARTS, H, C), dtype=jnp.float32)
    b1 = 0.1 * jax.random.normal(k[2], (NUM_PARTS, H, 1), dtype=jnp.float32)
    w2 = 0.1 * jax.random.normal(k[3], (NUM_PARTS, C, H), dtype=jnp.float32)
    b2 = 0.1 * jax.random.normal(k[4], (NUM_PARTS, C, 1), dtype=jnp.float32)

    out = channel_attention(x, w1, b1, w2, b2)
    jax.block_until_ready(out)

    ref = channel_attention_reference(x, w1, b1, w2, b2)
    np.testing.assert_allclose(np.asarray(out), np.asarray(ref), rtol=1e-5, atol=1e-5)

    print("KERNEL_OK")
</pallas_src>

<mosaic_0001>
module attributes {stable_mosaic.version = 11 : i64} {
  func.func @channel_attention_kernel(%arg0: i32, %arg1: memref<1x32x8x50xf32, #tpu.memory_space<vmem>>, %arg2: memref<10x50xf32, #tpu.memory_space<vmem>>, %arg3: memref<10x50xf32, #tpu.memory_space<vmem>>, %arg4: memref<50x50xf32, #tpu.memory_space<vmem>>, %arg5: memref<32x20xf32, #tpu.memory_space<vmem>>, %arg6: memref<1x20xf32, #tpu.memory_space<vmem>>, %arg7: memref<20x20xf32, #tpu.memory_space<vmem>>, %arg8: memref<20x32xf32, #tpu.memory_space<vmem>>, %arg9: memref<20x32xf32, #tpu.memory_space<vmem>>, %arg10: memref<1x256x50xf32, #tpu.memory_space<vmem>>) attributes {dimension_semantics = [#tpu.dimension_semantics<parallel>], iteration_bounds = array<i64: 2>, scalar_prefetch = 0 : i64, scratch_operands = 0 : i64, tpu.core_type = #tpu.core_type<tc>, window_params = [{transform_indices = @transform_0, window_bounds = array<i64: 1, 32, 8, 50>}, {pipeline_mode = #tpu.pipeline_mode<synchronous>, transform_indices = @transform_1, window_bounds = array<i64: 10, 50>}, {pipeline_mode = #tpu.pipeline_mode<synchronous>, transform_indices = @transform_2, window_bounds = array<i64: 10, 50>}, {pipeline_mode = #tpu.pipeline_mode<synchronous>, transform_indices = @transform_3, window_bounds = array<i64: 50, 50>}, {pipeline_mode = #tpu.pipeline_mode<synchronous>, transform_indices = @transform_4, window_bounds = array<i64: 32, 20>}, {pipeline_mode = #tpu.pipeline_mode<synchronous>, transform_indices = @transform_5, window_bounds = array<i64: 1, 20>}, {pipeline_mode = #tpu.pipeline_mode<synchronous>, transform_indices = @transform_6, window_bounds = array<i64: 20, 20>}, {pipeline_mode = #tpu.pipeline_mode<synchronous>, transform_indices = @transform_7, window_bounds = array<i64: 20, 32>}, {pipeline_mode = #tpu.pipeline_mode<synchronous>, transform_indices = @transform_8, window_bounds = array<i64: 20, 32>}, {transform_indices = @transform_9, window_bounds = array<i64: 1, 256, 50>}]} {
    %c0 = arith.constant 0 : index
    %c0_0 = arith.constant 0 : index
    %c0_1 = arith.constant 0 : index
    %c0_2 = arith.constant 0 : index
    %0 = vector.load %arg1[%c0, %c0_0, %c0_1, %c0_2] : memref<1x32x8x50xf32, #tpu.memory_space<vmem>>, vector<1x32x8x50xf32>
    %1 = vector.shape_cast %0 : vector<1x32x8x50xf32> to vector<32x8x50xf32>
    %c0_3 = arith.constant 0 : index
    %c0_4 = arith.constant 0 : index
    %2 = vector.load %arg2[%c0_3, %c0_4] : memref<10x50xf32, #tpu.memory_space<vmem>>, vector<10x50xf32>
    %cst = arith.constant dense<0.000000e+00> : vector<32x50xf32>
    %3 = vector.multi_reduction <add>, %1, %cst [1] : vector<32x8x50xf32> to vector<32x50xf32>
    %cst_5 = arith.constant dense<0xFF800000> : vector<32x50xf32>
    %4 = vector.multi_reduction <maximumf>, %1, %cst_5 [1] : vector<32x8x50xf32> to vector<32x50xf32>
    %c0_6 = arith.constant 0 : index
    %c0_7 = arith.constant 0 : index
    %5 = vector.load %arg3[%c0_6, %c0_7] : memref<10x50xf32, #tpu.memory_space<vmem>>, vector<10x50xf32>
    %6 = vector.shape_cast %5 : vector<10x50xf32> to vector<10x1x50xf32>
    %7 = vector.shape_cast %3 : vector<32x50xf32> to vector<1x32x50xf32>
    %8 = vector.broadcast %6 : vector<10x1x50xf32> to vector<10x32x50xf32>
    %9 = vector.broadcast %7 : vector<1x32x50xf32> to vector<10x32x50xf32>
    %10 = arith.mulf %8, %9 : vector<10x32x50xf32>
    %cst_8 = arith.constant dense<0.000000e+00> : vector<10x32xf32>
    %11 = vector.multi_reduction <add>, %10, %cst_8 [2] : vector<10x32x50xf32> to vector<10x32xf32>
    %12 = vector.shape_cast %2 : vector<10x50xf32> to vector<10x1x50xf32>
    %cst_9 = arith.constant 5.000000e-01 : f32
    %13 = vector.broadcast %cst_9 : f32 to vector<10x1x50xf32>
    %14 = arith.cmpf ogt, %12, %13 : vector<10x1x50xf32>
    %15 = vector.shape_cast %4 : vector<32x50xf32> to vector<1x32x50xf32>
    %cst_10 = arith.constant 0xFF800000 : f32
    %16 = vector.shape_cast %14 : vector<10x1x50xi1> to vector<10x1x50xi1>
    %17 = vector.broadcast %16 : vector<10x1x50xi1> to vector<10x32x50xi1>
    %18 = vector.shape_cast %15 : vector<1x32x50xf32> to vector<1x32x50xf32>
    %19 = vector.broadcast %18 : vector<1x32x50xf32> to vector<10x32x50xf32>
    %20 = vector.broadcast %cst_10 : f32 to vector<10x32x50xf32>
    %21 = arith.select %17, %19, %20 : vector<10x32x50xi1>, vector<10x32x50xf32>
    %cst_11 = arith.constant dense<0xFF800000> : vector<10x32xf32>
    %22 = vector.multi_reduction <maximumf>, %21, %cst_11 [2] : vector<10x32x50xf32> to vector<10x32xf32>
    %23 = tpu.concatenate %11, %22 in 0 : vector<10x32xf32>, vector<10x32xf32> -> vector<20x32xf32>
    %c0_12 = arith.constant 0 : index
    %c0_13 = arith.constant 0 : index
    %24 = vector.load %arg5[%c0_12, %c0_13] : memref<32x20xf32, #tpu.memory_space<vmem>>, vector<32x20xf32>
    %cst_14 = arith.constant dense<0.000000e+00> : vector<20x20xf32>
    %25 = tpu.matmul %23, %24, %cst_14 {dimension_numbers = #tpu.dot_dimension_numbers<[1], [0], [0], [1], [0, 0, 1, 1], [], []>} : vector<20x32xf32>, vector<32x20xf32>, vector<20x20xf32> -> vector<20x20xf32>
    %c0_15 = arith.constant 0 : index
    %c0_16 = arith.constant 0 : index
    %26 = vector.load %arg6[%c0_15, %c0_16] : memref<1x20xf32, #tpu.memory_space<vmem>>, vector<1x20xf32>
    %27 = vector.broadcast %26 : vector<1x20xf32> to vector<20x20xf32>
    %28 = arith.addf %25, %27 : vector<20x20xf32>
    %cst_17 = arith.constant 0.000000e+00 : f32
    %29 = vector.broadcast %cst_17 : f32 to vector<20x20xf32>
    %30 = arith.maximumf %28, %29 : vector<20x20xf32>
    %c0_18 = arith.constant 0 : index
    %c0_19 = arith.constant 0 : index
    %31 = vector.load %arg7[%c0_18, %c0_19] : memref<20x20xf32, #tpu.memory_space<vmem>>, vector<20x20xf32>
    %32 = arith.mulf %30, %31 : vector<20x20xf32>
    %c0_20 = arith.constant 0 : index
    %c0_21 = arith.constant 0 : index
    %33 = vector.load %arg8[%c0_20, %c0_21] : memref<20x32xf32, #tpu.memory_space<vmem>>, vector<20x32xf32>
    %cst_22 = arith.constant dense<0.000000e+00> : vector<20x32xf32>
    %34 = tpu.matmul %32, %33, %cst_22 {dimension_numbers = #tpu.dot_dimension_numbers<[1], [0], [0], [1], [0, 0, 1, 1], [], []>} : vector<20x20xf32>, vector<20x32xf32>, vector<20x32xf32> -> vector<20x32xf32>
    %c0_23 = arith.constant 0 : index
    %c0_24 = arith.constant 0 : index
    %35 = vector.load %arg9[%c0_23, %c0_24] : memref<20x32xf32, #tpu.memory_space<vmem>>, vector<20x32xf32>
    %36 = arith.addf %34, %35 : vector<20x32xf32>
    %37 = vector.extract_strided_slice %36 {offsets = [0, 0], sizes = [10, 32], strides = [1, 1]} : vector<20x32xf32> to vector<10x32xf32>
    %38 = vector.extract_strided_slice %36 {offsets = [10, 0], sizes = [10, 32], strides = [1, 1]} : vector<20x32xf32> to vector<10x32xf32>
    %39 = arith.addf %37, %38 : vector<10x32xf32>
    %40 = arith.negf %39 : vector<10x32xf32>
    %41 = math.exp %40 : vector<10x32xf32>
    %cst_25 = arith.constant 1.000000e+00 : f32
    %42 = vector.broadcast %cst_25 : f32 to vector<10x32xf32>
    %43 = arith.addf %42, %41 : vector<10x32xf32>
    %44 = arith.divf %42, %43 : vector<10x32xf32>
    %45 = tpu.transpose %44, [1, 0] : vector<10x32xf32> -> vector<32x10xf32>
    %cst_26 = arith.constant dense<0.000000e+00> : vector<32x50xf32>
    %46 = tpu.matmul %45, %2, %cst_26 {dimension_numbers = #tpu.dot_dimension_numbers<[1], [0], [0], [1], [0, 0, 1, 1], [], []>} : vector<32x10xf32>, vector<10x50xf32>, vector<32x50xf32> -> vector<32x50xf32>
    %47 = vector.shape_cast %46 : vector<32x50xf32> to vector<32x1x50xf32>
    %48 = vector.broadcast %47 : vector<32x1x50xf32> to vector<32x8x50xf32>
    %49 = arith.mulf %1, %48 : vector<32x8x50xf32>
    %50 = vector.shape_cast %49 : vector<32x8x50xf32> to vector<256x50xf32>
    %c0_27 = arith.constant 0 : index
    %c0_28 = arith.constant 0 : index
    %51 = vector.load %arg4[%c0_27, %c0_28] : memref<50x50xf32, #tpu.memory_space<vmem>>, vector<50x50xf32>
    %cst_29 = arith.constant dense<0.000000e+00> : vector<256x50xf32>
    %52 = tpu.matmul %50, %51, %cst_29 {dimension_numbers = #tpu.dot_dimension_numbers<[1], [0], [0], [1], [0, 0, 1, 1], [], []>} : vector<256x50xf32>, vector<50x50xf32>, vector<256x50xf32> -> vector<256x50xf32>
    %c0_30 = arith.constant 0 : index
    %c0_31 = arith.constant 0 : index
    %c0_32 = arith.constant 0 : index
    %53 = vector.load %arg10[%c0_30, %c0_31, %c0_32] : memref<1x256x50xf32, #tpu.memory_space<vmem>>, vector<1x256x50xf32>
    %54 = vector.shape_cast %53 : vector<1x256x50xf32> to vector<256x50xf32>
    %55 = vector.shape_cast %52 : vector<256x50xf32> to vector<1x256x50xf32>
    tpu.vector_store %arg10[%c0_30, %c0_31, %c0_32], %55 {strides = array<i32>} : memref<1x256x50xf32, #tpu.memory_space<vmem>>, vector<1x256x50xf32>,
    return
  }
  func.func @transform_0(%arg0: i32) -> (i32, i32, i32, i32) {
    %c0_i32 = arith.constant 0 : i32
    %c0_i32_0 = arith.constant 0 : i32
    %c0_i32_1 = arith.constant 0 : i32
    %c0_i32_2 = arith.constant 0 : i32
    return %arg0, %c0_i32, %c0_i32_0, %c0_i32_1 : i32, i32, i32, i32
  }
  func.func @transform_1(%arg0: i32) -> (i32, i32) {
    %c0_i32 = arith.constant 0 : i32
    %c0_i32_0 = arith.constant 0 : i32
    %c0_i32_1 = arith.constant 0 : i32
    return %c0_i32, %c0_i32_0 : i32, i32
  }
  func.func @transform_2(%arg0: i32) -> (i32, i32) {
    %c0_i32 = arith.constant 0 : i32
    %c0_i32_0 = arith.constant 0 : i32
    %c0_i32_1 = arith.constant 0 : i32
    return %c0_i32, %c0_i32_0 : i32, i32
  }
  func.func @transform_3(%arg0: i32) -> (i32, i32) {
    %c0_i32 = arith.constant 0 : i32
    %c0_i32_0 = arith.constant 0 : i32
    %c0_i32_1 = arith.constant 0 : i32
    return %c0_i32, %c0_i32_0 : i32, i32
  }
  func.func @transform_4(%arg0: i32) -> (i32, i32) {
    %c0_i32 = arith.constant 0 : i32
    %c0_i32_0 = arith.constant 0 : i32
    %c0_i32_1 = arith.constant 0 : i32
    return %c0_i32, %c0_i32_0 : i32, i32
  }
  func.func @transform_5(%arg0: i32) -> (i32, i32) {
    %c0_i32 = arith.constant 0 : i32
    %c0_i32_0 = arith.constant 0 : i32
    %c0_i32_1 = arith.constant 0 : i32
    return %c0_i32, %c0_i32_0 : i32, i32
  }
  func.func @transform_6(%arg0: i32) -> (i32, i32) {
    %c0_i32 = arith.constant 0 : i32
    %c0_i32_0 = arith.constant 0 : i32
    %c0_i32_1 = arith.constant 0 : i32
    return %c0_i32, %c0_i32_0 : i32, i32
  }
  func.func @transform_7(%arg0: i32) -> (i32, i32) {
    %c0_i32 = arith.constant 0 : i32
    %c0_i32_0 = arith.constant 0 : i32
    %c0_i32_1 = arith.constant 0 : i32
    return %c0_i32, %c0_i32_0 : i32, i32
  }
  func.func @transform_8(%arg0: i32) -> (i32, i32) {
    %c0_i32 = arith.constant 0 : i32
    %c0_i32_0 = arith.constant 0 : i32
    %c0_i32_1 = arith.constant 0 : i32
    return %c0_i32, %c0_i32_0 : i32, i32
  }
  func.func @transform_9(%arg0: i32) -> (i32, i32, i32) {
    %c0_i32 = arith.constant 0 : i32
    %c0_i32_0 = arith.constant 0 : i32
    %c0_i32_1 = arith.constant 0 : i32
    return %arg0, %c0_i32, %c0_i32_0 : i32, i32, i32
  }
}

</mosaic_0001>

<llo_original>
// kernel: tpu_custom_call.1
$region0: #{tpu_custom_call.1}
  #allocation0 [shape = 'u32[]', space=smem, size = 0x4, offset = 0x4, fixed_abs, tag = 'smem constant byte address 0x4 - core index']
  #allocation1 [shape = 'u32[72,128]{1,0:T(1,128)}', space=vmem, size = 0x9000, scoped, tag = 'internal scratch']
  %s0 = inlined_call_operand.hbm [shape: f32[2,32,8,50], index: 0, kind: input, shape index: {}]
  %s1 = inlined_call_operand.hbm [shape: f32[10,50], index: 1, kind: input, shape index: {}]
  %s2 = inlined_call_operand.hbm [shape: f32[10,50], index: 2, kind: input, shape index: {}]
  %s3 = inlined_call_operand.vmem [shape: f32[50,50], index: 3, kind: input, shape index: {}]
  %s4 = inlined_call_operand.vmem [shape: f32[32,20], index: 4, kind: input, shape index: {}]
  %s5 = inlined_call_operand.vmem [shape: f32[1,20], index: 5, kind: input, shape index: {}]
  %s6 = inlined_call_operand.hbm [shape: f32[20,20], index: 6, kind: input, shape index: {}]
  %s7 = inlined_call_operand.hbm [shape: f32[20,32], index: 7, kind: input, shape index: {}]
  %s8 = inlined_call_operand.hbm [shape: f32[20,32], index: 8, kind: input, shape index: {}]
  %s9 = inlined_call_operand.vmem [shape: f32[2,256,50], index: 9, kind: output, shape index: {}]
  %s10 = sld [smem:[#allocation0]]
  $region93: #{tpu_custom_call.1} parent=0
    _
  %s12 = ssub.s32 1, %s10
  %s13 = scalar_select 0, %s12, %s10
  $region1: #{tpu_custom_call.1} parent=0
    #allocation2 [shape = 'u8[262144]{0}', space=vmem, size = 0x40000, scoped, tag = 'input window, operand 0']
    #allocation3 [shape = 's32[2]{0}', space=sflag, size = 0x8, scoped, tag = 'scoped memory for tpu_custom_call.1']
    #allocation4 [shape = 'u8[8192]{0}', space=vmem, size = 0x2000, scoped, tag = 'input window, operand 1, single buffered']
    #allocation5 [shape = 's32[1]{0}', space=sflag, size = 0x4, scoped, tag = 'scoped memory for tpu_custom_call.1']
    #allocation6 [shape = 'u8[8192]{0}', space=vmem, size = 0x2000, scoped, tag = 'input window, operand 2, single buffered']
    #allocation7 [shape = 'u8[12288]{0}', space=vmem, size = 0x3000, scoped, tag = 'input window, operand 6, single buffered']
    #allocation8 [shape = 's32[1]{0}', space=sflag, size = 0x4, scoped, tag = 'scoped memory for tpu_custom_call.1']
    #allocation9 [shape = 'u8[12288]{0}', space=vmem, size = 0x3000, scoped, tag = 'input window, operand 7, single buffered']
    #allocation10 [shape = 'u8[12288]{0}', space=vmem, size = 0x3000, scoped, tag = 'input window, operand 8, single buffered']
    #allocation11 [shape = 's32[1]{0}', space=sflag, size = 0x4, scoped, tag = 'scoped memory for tpu_custom_call.1']
    %14 = vsyncpa [#allocation3], 0
    %s15 = scalar_lea.sflag [#allocation3], 1
    %16 = vsyncpa %s15, 0
    %17 = vsyncpa [#allocation5], 0
    %18 = vsyncpa [#allocation8], 0
    %19 = vsyncpa [#allocation11], 0
    loop: start=0, step=1, limit=4
    $region2: #{tpu_custom_call.1} parent=1 // loop_pre_header
      _
    $region3: #{tpu_custom_call.1} parent=1 // loop_header
      %s21 = sphi 0, %s25
      %p22 = scmp.ge.s32.totalorder %s21, 4
      %s31 = sphi 0, %s33
      %s34 = sphi 0, %s31
      %s35 = sphi 0, %s34
      %s51 = sphi 0, %s35
      %s55 = sphi 0, %s55
      %s57 = sphi 0, %s55
      %s58 = sphi 0, %s57
      %s72 = sphi 0, %s58
      %s76 = sphi 0, %s76
      %s78 = sphi 0, %s76
      %s79 = sphi 0, %s78
      %s93 = sphi 0, %s79
      %s97 = sphi 0, %s97
      %s99 = sphi 0, %s97
      %s100 = sphi 0, %s99
      %s114 = sphi 0, %s100
      %s118 = sphi 0, %s118
      %s120 = sphi 0, %s118
      %s121 = sphi 0, %s120
      %s135 = sphi 0, %s121
      %s139 = sphi 0, %s139
      %s141 = sphi 0, %s139
      %s142 = sphi 0, %s141
      %s156 = sphi 0, %s142
      %s160 = sphi 0, %s160
      %s162 = sphi 0, %s160
      %s163 = sphi 0, %s162
      %s177 = sphi 0, %s163
      %s181 = sphi 0, %s181
      %s183 = sphi 0, %s181
      %s184 = sphi 0, %s183
      %s198 = sphi 0, %s184
      %s202 = sphi 0, %s202
      %s204 = sphi 0, %s202
      %s205 = sphi 0, %s204
      %s219 = sphi 0, %s205
      %s225 = sphi 0, %s227
      %s228 = sphi 0, %s225
      %s229 = sphi 0, %s228
      %s245 = sphi 0, %s229
    $region4: #{tpu_custom_call.1} parent=1 // loop_header_branch
      %24 = sbr.rel (%p22) target = $region8
    $region5: #{tpu_custom_call.1} parent=1 // loop_body
      %s26 = ssub.s32 %s21, 1
      %s27 = ssub.s32 %s21, 2
      %s28 = sadd.s32 %s21, 1
      %s29 = ssub.s32 %s21, %s28
      %p30 = scmp.eq.s32.totalorder %s29, 0
      %s32 = sadd.s32 %s31, 1
      %s33 = scalar_select %p30, %s31, %s32
      %p36 = pneg %p30
      %p37 = scmp.eq.s32.totalorder %s21, 1
      %p38 = por %p36, %p37
      %p39 = scmp.ne.s32.totalorder %s31, %s34
      %p40 = scmp.eq.s32.totalorder %s21, 0
      %p41 = por %p39, %p40
      %p42 = scmp.ne.s32.totalorder %s31, %s34
      %p43 = scmp.eq.s32.totalorder %s26, 1
      %p44 = por %p42, %p43
      %p45 = scmp.ne.s32.totalorder %s34, %s35
      %p46 = scmp.eq.s32.totalorder %s26, 0
      %p47 = por %p45, %p46
      %p48 = scmp.ne.s32.totalorder %s34, %s35
      %p49 = scmp.eq.s32.totalorder %s27, 1
      %p50 = por %p48, %p49
      %p52 = scmp.ne.s32.totalorder %s35, %s51
      %p53 = scmp.eq.s32.totalorder %s27, 0
      %p54 = por %p52, %p53
      %s56 = sadd.s32 %s55, 1
      %p59 = scmp.eq.s32.totalorder %s21, 1
      %p60 = scmp.ne.s32.totalorder %s55, %s57
      %p61 = scmp.eq.s32.totalorder %s21, 0
      %p62 = por %p60, %p61
      %p63 = scmp.ne.s32.totalorder %s55, %s57
      %p64 = scmp.eq.s32.totalorder %s26, 1
      %p65 = por %p63, %p64
      %p66 = scmp.ne.s32.totalorder %s57, %s58
      %p67 = scmp.eq.s32.totalorder %s26, 0
      %p68 = por %p66, %p67
      %p69 = scmp.ne.s32.totalorder %s57, %s58
      %p70 = scmp.eq.s32.totalorder %s27, 1
      %p71 = por %p69, %p70
      %p73 = scmp.ne.s32.totalorder %s58, %s72
      %p74 = scmp.eq.s32.totalorder %s27, 0
      %p75 = por %p73, %p74
      %s77 = sadd.s32 %s76, 1
      %p80 = scmp.eq.s32.totalorder %s21, 1
      %p81 = scmp.ne.s32.totalorder %s76, %s78
      %p82 = scmp.eq.s32.totalorder %s21, 0
      %p83 = por %p81, %p82
      %p84 = scmp.ne.s32.totalorder %s76, %s78
      %p85 = scmp.eq.s32.totalorder %s26, 1
      %p86 = por %p84, %p85
      %p87 = scmp.ne.s32.totalorder %s78, %s79
      %p88 = scmp.eq.s32.totalorder %s26, 0
      %p89 = por %p87, %p88
      %p90 = scmp.ne.s32.totalorder %s78, %s79
      %p91 = scmp.eq.s32.totalorder %s27, 1
      %p92 = por %p90, %p91
      %p94 = scmp.ne.s32.totalorder %s79, %s93
      %p95 = scmp.eq.s32.totalorder %s27, 0
      %p96 = por %p94, %p95
      %s98 = sadd.s32 %s97, 1
      %p101 = scmp.eq.s32.totalorder %s21, 1
      %p102 = scmp.ne.s32.totalorder %s97, %s99
      %p103 = scmp.eq.s32.totalorder %s21, 0
      %p104 = por %p102, %p103
      %p105 = scmp.ne.s32.totalorder %s97, %s99
      %p106 = scmp.eq.s32.totalorder %s26, 1
      %p107 = por %p105, %p106
      %p108 = scmp.ne.s32.totalorder %s99, %s100
      %p109 = scmp.eq.s32.totalorder %s26, 0
      %p110 = por %p108, %p109
      %p111 = scmp.ne.s32.totalorder %s99, %s100
      %p112 = scmp.eq.s32.totalorder %s27, 1
      %p113 = por %p111, %p112
      %p115 = scmp.ne.s32.totalorder %s100, %s114
      %p116 = scmp.eq.s32.totalorder %s27, 0
      %p117 = por %p115, %p116
      %s119 = sadd.s32 %s118, 1
      %p122 = scmp.eq.s32.totalorder %s21, 1
      %p123 = scmp.ne.s32.totalorder %s118, %s120
      %p124 = scmp.eq.s32.totalorder %s21, 0
      %p125 = por %p123, %p124
      %p126 = scmp.ne.s32.totalorder %s118, %s120
      %p127 = scmp.eq.s32.totalorder %s26, 1
      %p128 = por %p126, %p127
      %p129 = scmp.ne.s32.totalorder %s120, %s121
      %p130 = scmp.eq.s32.totalorder %s26, 0
      %p131 = por %p129, %p130
      %p132 = scmp.ne.s32.totalorder %s120, %s121
      %p133 = scmp.eq.s32.totalorder %s27, 1
      %p134 = por %p132, %p133
      %p136 = scmp.ne.s32.totalorder %s121, %s135
      %p137 = scmp.eq.s32.totalorder %s27, 0
      %p138 = por %p136, %p137
      %s140 = sadd.s32 %s139, 1
      %p143 = scmp.eq.s32.totalorder %s21, 1
      %p144 = scmp.ne.s32.totalorder %s139, %s141
      %p145 = scmp.eq.s32.totalorder %s21, 0
      %p146 = por %p144, %p145
      %p147 = scmp.ne.s32.totalorder %s139, %s141
      %p148 = scmp.eq.s32.totalorder %s26, 1
      %p149 = por %p147, %p148
      %p150 = scmp.ne.s32.totalorder %s141, %s142
      %p151 = scmp.eq.s32.totalorder %s26, 0
      %p152 = por %p150, %p151
      %p153 = scmp.ne.s32.totalorder %s141, %s142
      %p154 = scmp.eq.s32.totalorder %s27, 1
      %p155 = por %p153, %p154
      %p157 = scmp.ne.s32.totalorder %s142, %s156
      %p158 = scmp.eq.s32.totalorder %s27, 0
      %p159 = por %p157, %p158
      %s161 = sadd.s32 %s160, 1
      %p164 = scmp.eq.s32.totalorder %s21, 1
      %p165 = scmp.ne.s32.totalorder %s160, %s162
      %p166 = scmp.eq.s32.totalorder %s21, 0
      %p167 = por %p165, %p166
      %p168 = scmp.ne.s32.totalorder %s160, %s162
      %p169 = scmp.eq.s32.totalorder %s26, 1
      %p170 = por %p168, %p169
      %p171 = scmp.ne.s32.totalorder %s162, %s163
      %p172 = scmp.eq.s32.totalorder %s26, 0
      %p173 = por %p171, %p172
      %p174 = scmp.ne.s32.totalorder %s162, %s163
      %p175 = scmp.eq.s32.totalorder %s27, 1
      %p176 = por %p174, %p175
      %p178 = scmp.ne.s32.totalorder %s163, %s177
      %p179 = scmp.eq.s32.totalorder %s27, 0
      %p180 = por %p178, %p179
      %s182 = sadd.s32 %s181, 1
      %p185 = scmp.eq.s32.totalorder %s21, 1
      %p186 = scmp.ne.s32.totalorder %s181, %s183
      %p187 = scmp.eq.s32.totalorder %s21, 0
      %p188 = por %p186, %p187
      %p189 = scmp.ne.s32.totalorder %s181, %s183
      %p190 = scmp.eq.s32.totalorder %s26, 1
      %p191 = por %p189, %p190
      %p192 = scmp.ne.s32.totalorder %s183, %s184
      %p193 = scmp.eq.s32.totalorder %s26, 0
      %p194 = por %p192, %p193
      %p195 = scmp.ne.s32.totalorder %s183, %s184
      %p196 = scmp.eq.s32.totalorder %s27, 1
      %p197 = por %p195, %p196
      %p199 = scmp.ne.s32.totalorder %s184, %s198
      %p200 = scmp.eq.s32.totalorder %s27, 0
      %p201 = por %p199, %p200
      %s203 = sadd.s32 %s202, 1
      %p206 = scmp.eq.s32.totalorder %s21, 1
      %p207 = scmp.ne.s32.totalorder %s202, %s204
      %p208 = scmp.eq.s32.totalorder %s21, 0
      %p209 = por %p207, %p208
      %p210 = scmp.ne.s32.totalorder %s202, %s204
      %p211 = scmp.eq.s32.totalorder %s26, 1
      %p212 = por %p210, %p211
      %p213 = scmp.ne.s32.totalorder %s204, %s205
      %p214 = scmp.eq.s32.totalorder %s26, 0
      %p215 = por %p213, %p214
      %p216 = scmp.ne.s32.totalorder %s204, %s205
      %p217 = scmp.eq.s32.totalorder %s27, 1
      %p218 = por %p216, %p217
      %p220 = scmp.ne.s32.totalorder %s205, %s219
      %p221 = scmp.eq.s32.totalorder %s27, 0
      %p222 = por %p220, %p221
      %s223 = ssub.s32 %s21, %s28
      %p224 = scmp.eq.s32.totalorder %s223, 0
      %s226 = sadd.s32 %s225, 1
      %s227 = scalar_select %p224, %s225, %s226
      %p230 = pneg %p224
      %p231 = scmp.eq.s32.totalorder %s21, 1
      %p232 = por %p230, %p231
      %p233 = scmp.ne.s32.totalorder %s225, %s228
      %p234 = scmp.eq.s32.totalorder %s21, 0
      %p235 = por %p233, %p234
      %p236 = scmp.ne.s32.totalorder %s225, %s228
      %p237 = scmp.eq.s32.totalorder %s26, 1
      %p238 = por %p236, %p237
      %p239 = scmp.ne.s32.totalorder %s228, %s229
      %p240 = scmp.eq.s32.totalorder %s26, 0
      %p241 = por %p239, %p240
      %p242 = scmp.ne.s32.totalorder %s228, %s229
      %p243 = scmp.eq.s32.totalorder %s27, 1
      %p244 = por %p242, %p243
      %p246 = scmp.ne.s32.totalorder %s229, %s245
      %p247 = scmp.eq.s32.totalorder %s27, 0
      %p248 = por %p246, %p247
      %p249 = scmp.le.s32.totalorder 1, %s21
      %p250 = scmp.lt.s32.totalorder %s21, 3
      %p251 = pnand %p249, %p250
      %p252 = pneg %p251
      // Predicated region
      $region9: #{tpu_custom_call.1} parent=5 // pred_check
        _
      $region10: #{tpu_custom_call.1} parent=5 // pred_check_branch
        %254 = sbr.rel (%p251) target = $region12
      $region11: #{tpu_custom_call.1} parent=5 // pred_region
        %s255 = ssub.s32 %s21, 1
        // Predicated region
        $region13: #{tpu_custom_call.1} parent=11 // pred_check
          %p256 = pneg %p68
        $region14: #{tpu_custom_call.1} parent=11 // pred_check_branch
          %258 = sbr.rel (%p256) target = $region16
        $region15: #{tpu_custom_call.1} parent=11 // pred_region
          %260 = vsyncadd [#allocation5], 0
          %s261 = sshll.u32 %s1, 4
          %s262 = int_to_ptr.hbm [resolvable:$true] %s261
          %s263 = sshll.u32 [#allocation4], 4
          %s264 = int_to_ptr.vmem [resolvable:$true] %s263
          %269 = dma.hbm_to_vmem [thread:$0]  %s262, 256, %s264, [#allocation5], 128, 128, 8
        $region16: #{tpu_custom_call.1} parent=11 // pred_fallthru
          _
        // Predicated region
        $region17: #{tpu_custom_call.1} parent=11 // pred_check
          %p270 = pneg %p89
        $region18: #{tpu_custom_call.1} parent=11 // pred_check_branch
          %272 = sbr.rel (%p270) target = $region20
        $region19: #{tpu_custom_call.1} parent=11 // pred_region
          %274 = vsyncadd [#allocation5], 0
          %s275 = sshll.u32 %s2, 4
          %s276 = int_to_ptr.hbm [resolvable:$true] %s275
          %s277 = sshll.u32 [#allocation6], 4
          %s278 = int_to_ptr.vmem [resolvable:$true] %s277
          %283 = dma.hbm_to_vmem [thread:$0]  %s276, 256, %s278, [#allocation5], 128, 128, 8
        $region20: #{tpu_custom_call.1} parent=11 // pred_fallthru
          _
        // Predicated region
        $region21: #{tpu_custom_call.1} parent=11 // pred_check
          %p284 = pneg %p110
        $region22: #{tpu_custom_call.1} parent=11 // pred_check_branch
          %286 = sbr.rel (%p284) target = $region24
        $region23: #{tpu_custom_call.1} parent=11 // pred_region
          _
        $region24: #{tpu_custom_call.1} parent=11 // pred_fallthru
          _
        // Predicated region
        $region25: #{tpu_custom_call.1} parent=11 // pred_check
          %p287 = pneg %p131
        $region26: #{tpu_custom_call.1} parent=11 // pred_check_branch
          %289 = sbr.rel (%p287) target = $region28
        $region27: #{tpu_custom_call.1} parent=11 // pred_region
          _
        $region28: #{tpu_custom_call.1} parent=11 // pred_fallthru
          _
        // Predicated region
        $region29: #{tpu_custom_call.1} parent=11 // pred_check
          %p290 = pneg %p152
        $region30: #{tpu_custom_call.1} parent=11 // pred_check_branch
          %292 = sbr.rel (%p290) target = $region32
        $region31: #{tpu_custom_call.1} parent=11 // pred_region
          _
        $region32: #{tpu_custom_call.1} parent=11 // pred_fallthru
          _
        // Predicated region
        $region33: #{tpu_custom_call.1} parent=11 // pred_check
          %p293 = pneg %p173
        $region34: #{tpu_custom_call.1} parent=11 // pred_check_branch
          %295 = sbr.rel (%p293) target = $region36
        $region35: #{tpu_custom_call.1} parent=11 // pred_region
          %297 = vsyncadd [#allocation8], 0
          %s298 = sshll.u32 %s6, 4
          %s299 = int_to_ptr.hbm [resolvable:$true] %s298
          %s300 = sshll.u32 [#allocation7], 4
          %s301 = int_to_ptr.vmem [resolvable:$true] %s300
          %306 = dma.hbm_to_vmem [thread:$0]  %s299, 384, %s301, [#allocation8], 128, 128, 8
        $region36: #{tpu_custom_call.1} parent=11 // pred_fallthru
          _
        // Predicated region
        $region37: #{tpu_custom_call.1} parent=11 // pred_check
          %p307 = pneg %p194
        $region38: #{tpu_custom_call.1} parent=11 // pred_check_branch
          %309 = sbr.rel (%p307) target = $region40
        $region39: #{tpu_custom_call.1} parent=11 // pred_region
          %311 = vsyncadd [#allocation8], 0
          %s312 = sshll.u32 %s7, 4
          %s313 = int_to_ptr.hbm [resolvable:$true] %s312
          %s314 = sshll.u32 [#allocation9], 4
          %s315 = int_to_ptr.vmem [resolvable:$true] %s314
          %320 = dma.hbm_to_vmem [thread:$0]  %s313, 384, %s315, [#allocation8], 128, 128, 8
        $region40: #{tpu_custom_call.1} parent=11 // pred_fallthru
          _
        // Predicated region
        $region41: #{tpu_custom_call.1} parent=11 // pred_check
          %p321 = pneg %p215
        $region42: #{tpu_custom_call.1} parent=11 // pred_check_branch
          %323 = sbr.rel (%p321) target = $region44
        $region43: #{tpu_custom_call.1} parent=11 // pred_region
          %325 = vsyncadd [#allocation11], 0
          %s326 = sshll.u32 %s8, 4
          %s327 = int_to_ptr.hbm [resolvable:$true] %s326
          %s328 = sshll.u32 [#allocation10], 4
          %s329 = int_to_ptr.vmem [resolvable:$true] %s328
          %334 = dma.hbm_to_vmem [thread:$0]  %s327, 384, %s329, [#allocation11], 128, 128, 8
        $region44: #{tpu_custom_call.1} parent=11 // pred_fallthru
          _
      $region12: #{tpu_custom_call.1} parent=5 // pred_fallthru
        _
      %p335 = scmp.lt.s32.totalorder %s21, 2
      // Predicated region
      $region45: #{tpu_custom_call.1} parent=5 // pred_check
        %p336 = pneg %p335
      $region46: #{tpu_custom_call.1} parent=5 // pred_check_branch
        %338 = sbr.rel (%p336) target = $region48
      $region47: #{tpu_custom_call.1} parent=5 // pred_region
        // Predicated region
        $region49: #{tpu_custom_call.1} parent=47 // pred_check
          %p339 = pneg %p41
        $region50: #{tpu_custom_call.1} parent=47 // pred_check_branch
          %341 = sbr.rel (%p339) target = $region52
        $region51: #{tpu_custom_call.1} parent=47 // pred_region
          %s342 = sand.u32 %s31, 1
          %s343 = scalar_lea.sflag [#allocation3], %s342
          %s344 = sand.u32 %s31, 1
          %s345 = smul.addr %s344, 256
          %s346 = scalar_lea.vmem [#allocation2], %s345
          %348 = vsyncadd %s343, 0
          %s349 = smul.addr %s21, 32
          %s350 = smul.addr %s349, 8
          %s351 = scalar_lea.hbm %s0, %s350
          %s352 = sshll.u32 %s351, 4
          %s353 = int_to_ptr.hbm [resolvable:$true] %s352
          %s354 = sshll.u32 %s346, 4
          %s355 = int_to_ptr.vmem [resolvable:$true] %s354
          %360 = dma.hbm_to_vmem [thread:$0]  %s353, 4096, %s355, %s343, 128, 128, 8
        $region52: #{tpu_custom_call.1} parent=47 // pred_fallthru
          _
      $region48: #{tpu_custom_call.1} parent=5 // pred_fallthru
        _
      %p361 = scmp.le.s32.totalorder 1, %s21
      %p362 = scmp.lt.s32.totalorder %s21, 3
      %p363 = pnand %p361, %p362
      %p364 = pneg %p363
      // Predicated region
      $region53: #{tpu_custom_call.1} parent=5 // pred_check
        _
      $region54: #{tpu_custom_call.1} parent=5 // pred_check_branch
        %366 = sbr.rel (%p363) target = $region56
      $region55: #{tpu_custom_call.1} parent=5 // pred_region
        %s367 = ssub.s32 %s21, 1
        %s368 = sand.u32 %s34, 1
        %s369 = scalar_lea.sflag [#allocation3], %s368
        %s370 = sand.u32 %s34, 1
        %s371 = smul.addr %s370, 256
        %s372 = scalar_lea.vmem [#allocation2], %s371
        // Predicated region
        $region57: #{tpu_custom_call.1} parent=55 // pred_check
          %p373 = pneg %p47
        $region58: #{tpu_custom_call.1} parent=55 // pred_check_branch
          %375 = sbr.rel (%p373) target = $region60
        $region59: #{tpu_custom_call.1} parent=55 // pred_region
          %377 = dma.done %s369, 4096
        $region60: #{tpu_custom_call.1} parent=55 // pred_fallthru
          _
        // Predicated region
        $region61: #{tpu_custom_call.1} parent=55 // pred_check
          %p378 = pneg %p68
        $region62: #{tpu_custom_call.1} parent=55 // pred_check_branch
          %380 = sbr.rel (%p378) target = $region64
        $region63: #{tpu_custom_call.1} parent=55 // pred_region
          %382 = dma.done [#allocation5], 256
        $region64: #{tpu_custom_call.1} parent=55 // pred_fallthru
          _
        // Predicated region
        $region65: #{tpu_custom_call.1} parent=55 // pred_check
          %p383 = pneg %p89
        $region66: #{tpu_custom_call.1} parent=55 // pred_check_branch
          %385 = sbr.rel (%p383) target = $region68
        $region67: #{tpu_custom_call.1} parent=55 // pred_region
          %387 = dma.done [#allocation5], 256
        $region68: #{tpu_custom_call.1} parent=55 // pred_fallthru
          _
        // Predicated region
        $region69: #{tpu_custom_call.1} parent=55 // pred_check
          %p388 = pneg %p173
        $region70: #{tpu_custom_call.1} parent=55 // pred_check_branch
          %390 = sbr.rel (%p388) target = $region72
        $region71: #{tpu_custom_call.1} parent=55 // pred_region
          %392 = dma.done [#allocation8], 384
        $region72: #{tpu_custom_call.1} parent=55 // pred_fallthru
          _
        // Predicated region
        $region73: #{tpu_custom_call.1} parent=55 // pred_check
          %p393 = pneg %p194
        $region74: #{tpu_custom_call.1} parent=55 // pred_check_branch
          %395 = sbr.rel (%p393) target = $region76
        $region75: #{tpu_custom_call.1} parent=55 // pred_region
          %397 = dma.done [#allocation8], 384
        $region76: #{tpu_custom_call.1} parent=55 // pred_fallthru
          _
        // Predicated region
        $region77: #{tpu_custom_call.1} parent=55 // pred_check
          %p398 = pneg %p215
        $region78: #{tpu_custom_call.1} parent=55 // pred_check_branch
          %400 = sbr.rel (%p398) target = $region80
        $region79: #{tpu_custom_call.1} parent=55 // pred_region
          %402 = dma.done [#allocation11], 384
        $region80: #{tpu_custom_call.1} parent=55 // pred_fallthru
          _
        %s403 = sand.u32 %s34, 1
        %s404 = scalar_lea.sflag [#allocation3], %s403
        %s405 = sand.u32 %s34, 1
        %s406 = smul.addr %s405, 256
        %s407 = scalar_lea.vmem [#allocation2], %s406
        %p408 = pneg %p47
        %p409 = pneg %p44
        %p410 = pneg %p68
        %p411 = pneg %p65
        %p412 = pneg %p89
        %p413 = pneg %p86
        %p414 = pneg %p110
        %p415 = pneg %p107
        %p416 = pneg %p131
        %p417 = pneg %p128
        %p418 = pneg %p152
        %p419 = pneg %p149
        %p420 = pneg %p173
        %p421 = pneg %p170
        %p422 = pneg %p194
        %p423 = pneg %p191
        %p424 = pneg %p215
        %p425 = pneg %p212
        %p426 = pneg %p241
        %p427 = pneg %p238
        %p428 = scmp.lt.s32.totalorder %s26, 1
        %s429 = scalar_select %p428, %s26, 1
        %s430 = smul.addr %s429, 32
        %s431 = smul.addr %s430, 8
        %s432 = scalar_lea.vmem %s9, %s431
        %p433 = scmp.lt.s32.totalorder %s26, 1
        %s434 = scalar_select %p433, %s26, 1
        %s435 = smul.addr %s434, 32
        %s436 = smul.addr %s435, 8
        %s437 = scalar_lea.vmem %s9, %s436
        %v438 = vld [vmem:[%s372] sm:$0xff]
        %v439 = vld [vmem:[%s372 + $0x8] sm:$0xff]
        %v440 = vld [vmem:[%s372 + $0x10] sm:$0xff]
        %v441 = vld [vmem:[%s372 + $0x18] sm:$0xff]
        %v442 = vld [vmem:[%s372 + $0x20] sm:$0xff]
        %v443 = vld [vmem:[%s372 + $0x28] sm:$0xff]
        %v444 = vld [vmem:[%s372 + $0x30] sm:$0xff]
        %v445 = vld [vmem:[%s372 + $0x38] sm:$0xff]
        %v446 = vld [vmem:[%s372 + $0x40] sm:$0xff]
        %v447 = vld [vmem:[%s372 + $0x48] sm:$0xff]
        %v448 = vld [vmem:[%s372 + $0x50] sm:$0xff]
        %v449 = vld [vmem:[%s372 + $0x58] sm:$0xff]
        %v450 = vld [vmem:[%s372 + $0x60] sm:$0xff]
        %v451 = vld [vmem:[%s372 + $0x68] sm:$0xff]
        %v452 = vld [vmem:[%s372 + $0x70] sm:$0xff]
        %v453 = vld [vmem:[%s372 + $0x78] sm:$0xff]
        %v454 = vld [vmem:[%s372 + $0x80] sm:$0xff]
        %v455 = vld [vmem:[%s372 + $0x88] sm:$0xff]
        %v456 = vld [vmem:[%s372 + $0x90] sm:$0xff]
        %v457 = vld [vmem:[%s372 + $0x98] sm:$0xff]
        %v458 = vld [vmem:[%s372 + $0xa0] sm:$0xff]
        %v459 = vld [vmem:[%s372 + $0xa8] sm:$0xff]
        %v460 = vld [vmem:[%s372 + $0xb0] sm:$0xff]
        %v461 = vld [vmem:[%s372 + $0xb8] sm:$0xff]
        %v462 = vld [vmem:[%s372 + $0xc0] sm:$0xff]
        %v463 = vld [vmem:[%s372 + $0xc8] sm:$0xff]
        %v464 = vld [vmem:[%s372 + $0xd0] sm:$0xff]
        %v465 = vld [vmem:[%s372 + $0xd8] sm:$0xff]
        %v466 = vld [vmem:[%s372 + $0xe0] sm:$0xff]
        %v467 = vld [vmem:[%s372 + $0xe8] sm:$0xff]
        %v468 = vld [vmem:[%s372 + $0xf0] sm:$0xff]
        %v469 = vld [vmem:[%s372 + $0xf8] sm:$0xff]
        %v470 = vld [vmem:[#allocation4] sm:$0xff]
        %v471 = vld [vmem:[#allocation4 + $0x8] sm:$0x3]
        %vm472 = vcmask 408576
        %v473 = vsel %vm472, %v438, 0.0
        %v474 = vrot.slane %v473, 4
        %v475 = vadd.f32 %v473, %v474
        %v476 = vrot.slane %v475, 2
        %v477 = vadd.f32 %v475, %v476
        %v478 = vrot.slane %v477, 1
        %v479 = vadd.f32 %v477, %v478
        %v480 = vsel %vm472, %v439, 0.0
        %v481 = vrot.slane %v480, 4
        %v482 = vadd.f32 %v480, %v481
        %v483 = vrot.slane %v482, 2
        %v484 = vadd.f32 %v482, %v483
        %v485 = vrot.slane %v484, 1
        %v486 = vadd.f32 %v484, %v485
        %v487 = vsel %vm472, %v440, 0.0
        %v488 = vrot.slane %v487, 4
        %v489 = vadd.f32 %v487, %v488
        %v490 = vrot.slane %v489, 2
        %v491 = vadd.f32 %v489, %v490
        %v492 = vrot.slane %v491, 1
        %v493 = vadd.f32 %v491, %v492
        %v494 = vsel %vm472, %v441, 0.0
        %v495 = vrot.slane %v494, 4
        %v496 = vadd.f32 %v494, %v495
        %v497 = vrot.slane %v496, 2
        %v498 = vadd.f32 %v496, %v497
        %v499 = vrot.slane %v498, 1
        %v500 = vadd.f32 %v498, %v499
        %v501 = vsel %vm472, %v442, 0.0
        %v502 = vrot.slane %v501, 4
        %v503 = vadd.f32 %v501, %v502
        %v504 = vrot.slane %v503, 2
        %v505 = vadd.f32 %v503, %v504
        %v506 = vrot.slane %v505, 1
        %v507 = vadd.f32 %v505, %v506
        %v508 = vsel %vm472, %v443, 0.0
        %v509 = vrot.slane %v508, 4
        %v510 = vadd.f32 %v508, %v509
        %v511 = vrot.slane %v510, 2
        %v512 = vadd.f32 %v510, %v511
        %v513 = vrot.slane %v512, 1
        %v514 = vadd.f32 %v512, %v513
        %v515 = vsel %vm472, %v444, 0.0
        %v516 = vrot.slane %v515, 4
        %v517 = vadd.f32 %v515, %v516
        %v518 = vrot.slane %v517, 2
        %v519 = vadd.f32 %v517, %v518
        %v520 = vrot.slane %v519, 1
        %v521 = vadd.f32 %v519, %v520
        %v522 = vsel %vm472, %v445, 0.0
        %v523 = vrot.slane %v522, 4
        %v524 = vadd.f32 %v522, %v523
        %v525 = vrot.slane %v524, 2
        %v526 = vadd.f32 %v524, %v525
        %v527 = vrot.slane %v526, 1
        %v528 = vadd.f32 %v526, %v527
        %v529 = vsel %vm472, %v446, 0.0
        %v530 = vrot.slane %v529, 4
        %v531 = vadd.f32 %v529, %v530
        %v532 = vrot.slane %v531, 2
        %v533 = vadd.f32 %v531, %v532
        %v534 = vrot.slane %v533, 1
        %v535 = vadd.f32 %v533, %v534
        %v536 = vsel %vm472, %v447, 0.0
        %v537 = vrot.slane %v536, 4
        %v538 = vadd.f32 %v536, %v537
        %v539 = vrot.slane %v538, 2
        %v540 = vadd.f32 %v538, %v539
        %v541 = vrot.slane %v540, 1
        %v542 = vadd.f32 %v540, %v541
        %v543 = vsel %vm472, %v448, 0.0
        %v544 = vrot.slane %v543, 4
        %v545 = vadd.f32 %v543, %v544
        %v546 = vrot.slane %v545, 2
        %v547 = vadd.f32 %v545, %v546
        %v548 = vrot.slane %v547, 1
        %v549 = vadd.f32 %v547, %v548
        %v550 = vsel %vm472, %v449, 0.0
        %v551 = vrot.slane %v550, 4
        %v552 = vadd.f32 %v550, %v551
        %v553 = vrot.slane %v552, 2
        %v554 = vadd.f32 %v552, %v553
        %v555 = vrot.slane %v554, 1
        %v556 = vadd.f32 %v554, %v555
        %v557 = vsel %vm472, %v450, 0.0
        %v558 = vrot.slane %v557, 4
        %v559 = vadd.f32 %v557, %v558
        %v560 = vrot.slane %v559, 2
        %v561 = vadd.f32 %v559, %v560
        %v562 = vrot.slane %v561, 1
        %v563 = vadd.f32 %v561, %v562
        %v564 = vsel %vm472, %v451, 0.0
        %v565 = vrot.slane %v564, 4
        %v566 = vadd.f32 %v564, %v565
        %v567 = vrot.slane %v566, 2
        %v568 = vadd.f32 %v566, %v567
        %v569 = vrot.slane %v568, 1
        %v570 = vadd.f32 %v568, %v569
        %v571 = vsel %vm472, %v452, 0.0
        %v572 = vrot.slane %v571, 4
        %v573 = vadd.f32 %v571, %v572
        %v574 = vrot.slane %v573, 2
        %v575 = vadd.f32 %v573, %v574
        %v576 = vrot.slane %v575, 1
        %v577 = vadd.f32 %v575, %v576
        %v578 = vsel %vm472, %v453, 0.0
        %v579 = vrot.slane %v578, 4
        %v580 = vadd.f32 %v578, %v579
        %v581 = vrot.slane %v580, 2
        %v582 = vadd.f32 %v580, %v581
        %v583 = vrot.slane %v582, 1
        %v584 = vadd.f32 %v582, %v583
        %v585 = vsel %vm472, %v454, 0.0
        %v586 = vrot.slane %v585, 4
        %v587 = vadd.f32 %v585, %v586
        %v588 = vrot.slane %v587, 2
        %v589 = vadd.f32 %v587, %v588
        %v590 = vrot.slane %v589, 1
        %v591 = vadd.f32 %v589, %v590
        %v592 = vsel %vm472, %v455, 0.0
        %v593 = vrot.slane %v592, 4
        %v594 = vadd.f32 %v592, %v593
        %v595 = vrot.slane %v594, 2
        %v596 = vadd.f32 %v594, %v595
        %v597 = vrot.slane %v596, 1
        %v598 = vadd.f32 %v596, %v597
        %v599 = vsel %vm472, %v456, 0.0
        %v600 = vrot.slane %v599, 4
        %v601 = vadd.f32 %v599, %v600
        %v602 = vrot.slane %v601, 2
        %v603 = vadd.f32 %v601, %v602
        %v604 = vrot.slane %v603, 1
        %v605 = vadd.f32 %v603, %v604
        %v606 = vsel %vm472, %v457, 0.0
        %v607 = vrot.slane %v606, 4
        %v608 = vadd.f32 %v606, %v607
        %v609 = vrot.slane %v608, 2
        %v610 = vadd.f32 %v608, %v609
        %v611 = vrot.slane %v610, 1
        %v612 = vadd.f32 %v610, %v611
        %v613 = vsel %vm472, %v458, 0.0
        %v614 = vrot.slane %v613, 4
        %v615 = vadd.f32 %v613, %v614
        %v616 = vrot.slane %v615, 2
        %v617 = vadd.f32 %v615, %v616
        %v618 = vrot.slane %v617, 1
        %v619 = vadd.f32 %v617, %v618
        %v620 = vsel %vm472, %v459, 0.0
        %v621 = vrot.slane %v620, 4
        %v622 = vadd.f32 %v620, %v621
        %v623 = vrot.slane %v622, 2
        %v624 = vadd.f32 %v622, %v623
        %v625 = vrot.slane %v624, 1
        %v626 = vadd.f32 %v624, %v625
        %v627 = vsel %vm472, %v460, 0.0
        %v628 = vrot.slane %v627, 4
        %v629 = vadd.f32 %v627, %v628
        %v630 = vrot.slane %v629, 2
        %v631 = vadd.f32 %v629, %v630
        %v632 = vrot.slane %v631, 1
        %v633 = vadd.f32 %v631, %v632
        %v634 = vsel %vm472, %v461, 0.0
        %v635 = vrot.slane %v634, 4
        %v636 = vadd.f32 %v634, %v635
        %v637 = vrot.slane %v636, 2
        %v638 = vadd.f32 %v636, %v637
        %v639 = vrot.slane %v638, 1
        %v640 = vadd.f32 %v638, %v639
        %v641 = vsel %vm472, %v462, 0.0
        %v642 = vrot.slane %v641, 4
        %v643 = vadd.f32 %v641, %v642
        %v644 = vrot.slane %v643, 2
        %v645 = vadd.f32 %v643, %v644
        %v646 = vrot.slane %v645, 1
        %v647 = vadd.f32 %v645, %v646
        %v648 = vsel %vm472, %v463, 0.0
        %v649 = vrot.slane %v648, 4
        %v650 = vadd.f32 %v648, %v649
        %v651 = vrot.slane %v650, 2
        %v652 = vadd.f32 %v650, %v651
        %v653 = vrot.slane %v652, 1
        %v654 = vadd.f32 %v652, %v653
        %v655 = vsel %vm472, %v464, 0.0
        %v656 = vrot.slane %v655, 4
        %v657 = vadd.f32 %v655, %v656
        %v658 = vrot.slane %v657, 2
        %v659 = vadd.f32 %v657, %v658
        %v660 = vrot.slane %v659, 1
        %v661 = vadd.f32 %v659, %v660
        %v662 = vsel %vm472, %v465, 0.0
        %v663 = vrot.slane %v662, 4
        %v664 = vadd.f32 %v662, %v663
        %v665 = vrot.slane %v664, 2
        %v666 = vadd.f32 %v664, %v665
        %v667 = vrot.slane %v666, 1
        %v668 = vadd.f32 %v666, %v667
        %v669 = vsel %vm472, %v466, 0.0
        %v670 = vrot.slane %v669, 4
        %v671 = vadd.f32 %v669, %v670
        %v672 = vrot.slane %v671, 2
        %v673 = vadd.f32 %v671, %v672
        %v674 = vrot.slane %v673, 1
        %v675 = vadd.f32 %v673, %v674
        %v676 = vsel %vm472, %v467, 0.0
        %v677 = vrot.slane %v676, 4
        %v678 = vadd.f32 %v676, %v677
        %v679 = vrot.slane %v678, 2
        %v680 = vadd.f32 %v678, %v679
        %v681 = vrot.slane %v680, 1
        %v682 = vadd.f32 %v680, %v681
        %v683 = vsel %vm472, %v468, 0.0
        %v684 = vrot.slane %v683, 4
        %v685 = vadd.f32 %v683, %v684
        %v686 = vrot.slane %v685, 2
        %v687 = vadd.f32 %v685, %v686
        %v688 = vrot.slane %v687, 1
        %v689 = vadd.f32 %v687, %v688
        %v690 = vsel %vm472, %v469, 0.0
        %v691 = vrot.slane %v690, 4
        %v692 = vadd.f32 %v690, %v691
        %v693 = vrot.slane %v692, 2
        %v694 = vadd.f32 %v692, %v693
        %v695 = vrot.slane %v694, 1
        %v696 = vadd.f32 %v694, %v695
        %v697 = vsel %vm472, %v438, -inf
        %v698 = vrot.slane %v697, 4
        %v699 = vmax.f32 %v697, %v698
        %v700 = vrot.slane %v699, 2
        %v701 = vmax.f32 %v699, %v700
        %v702 = vrot.slane %v701, 1
        %v703 = vmax.f32 %v701, %v702
        %v704 = vsel %vm472, %v439, -inf
        %v705 = vrot.slane %v704, 4
        %v706 = vmax.f32 %v704, %v705
        %v707 = vrot.slane %v706, 2
        %v708 = vmax.f32 %v706, %v707
        %v709 = vrot.slane %v708, 1
        %v710 = vmax.f32 %v708, %v709
        %v711 = vsel %vm472, %v440, -inf
        %v712 = vrot.slane %v711, 4
        %v713 = vmax.f32 %v711, %v712
        %v714 = vrot.slane %v713, 2
        %v715 = vmax.f32 %v713, %v714
        %v716 = vrot.slane %v715, 1
        %v717 = vmax.f32 %v715, %v716
        %v718 = vsel %vm472, %v441, -inf
        %v719 = vrot.slane %v718, 4
        %v720 = vmax.f32 %v718, %v719
        %v721 = vrot.slane %v720, 2
        %v722 = vmax.f32 %v720, %v721
        %v723 = vrot.slane %v722, 1
        %v724 = vmax.f32 %v722, %v723
        %v725 = vsel %vm472, %v442, -inf
        %v726 = vrot.slane %v725, 4
        %v727 = vmax.f32 %v725, %v726
        %v728 = vrot.slane %v727, 2
        %v729 = vmax.f32 %v727, %v728
        %v730 = vrot.slane %v729, 1
        %v731 = vmax.f32 %v729, %v730
        %v732 = vsel %vm472, %v443, -inf
        %v733 = vrot.slane %v732, 4
        %v734 = vmax.f32 %v732, %v733
        %v735 = vrot.slane %v734, 2
        %v736 = vmax.f32 %v734, %v735
        %v737 = vrot.slane %v736, 1
        %v738 = vmax.f32 %v736, %v737
        %v739 = vsel %vm472, %v444, -inf
        %v740 = vrot.slane %v739, 4
        %v741 = vmax.f32 %v739, %v740
        %v742 = vrot.slane %v741, 2
        %v743 = vmax.f32 %v741, %v742
        %v744 = vrot.slane %v743, 1
        %v745 = vmax.f32 %v743, %v744
        %v746 = vsel %vm472, %v445, -inf
        %v747 = vrot.slane %v746, 4
        %v748 = vmax.f32 %v746, %v747
        %v749 = vrot.slane %v748, 2
        %v750 = vmax.f32 %v748, %v749
        %v751 = vrot.slane %v750, 1
        %v752 = vmax.f32 %v750, %v751
        %v753 = vsel %vm472, %v446, -inf
        %v754 = vrot.slane %v753, 4
        %v755 = vmax.f32 %v753, %v754
        %v756 = vrot.slane %v755, 2
        %v757 = vmax.f32 %v755, %v756
        %v758 = vrot.slane %v757, 1
        %v759 = vmax.f32 %v757, %v758
        %v760 = vsel %vm472, %v447, -inf
        %v761 = vrot.slane %v760, 4
        %v762 = vmax.f32 %v760, %v761
        %v763 = vrot.slane %v762, 2
        %v764 = vmax.f32 %v762, %v763
        %v765 = vrot.slane %v764, 1
        %v766 = vmax.f32 %v764, %v765
        %v767 = vsel %vm472, %v448, -inf
        %v768 = vrot.slane %v767, 4
        %v769 = vmax.f32 %v767, %v768
        %v770 = vrot.slane %v769, 2
        %v771 = vmax.f32 %v769, %v770
        %v772 = vrot.slane %v771, 1
        %v773 = vmax.f32 %v771, %v772
        %v774 = vsel %vm472, %v449, -inf
        %v775 = vrot.slane %v774, 4
        %v776 = vmax.f32 %v774, %v775
        %v777 = vrot.slane %v776, 2
        %v778 = vmax.f32 %v776, %v777
        %v779 = vrot.slane %v778, 1
        %v780 = vmax.f32 %v778, %v779
        %v781 = vsel %vm472, %v450, -inf
        %v782 = vrot.slane %v781, 4
        %v783 = vmax.f32 %v781, %v782
        %v784 = vrot.slane %v783, 2
        %v785 = vmax.f32 %v783, %v784
        %v786 = vrot.slane %v785, 1
        %v787 = vmax.f32 %v785, %v786
        %v788 = vsel %vm472, %v451, -inf
        %v789 = vrot.slane %v788, 4
        %v790 = vmax.f32 %v788, %v789
        %v791 = vrot.slane %v790, 2
        %v792 = vmax.f32 %v790, %v791
        %v793 = vrot.slane %v792, 1
        %v794 = vmax.f32 %v792, %v793
        %v795 = vsel %vm472, %v452, -inf
        %v796 = vrot.slane %v795, 4
        %v797 = vmax.f32 %v795, %v796
        %v798 = vrot.slane %v797, 2
        %v799 = vmax.f32 %v797, %v798
        %v800 = vrot.slane %v799, 1
        %v801 = vmax.f32 %v799, %v800
        %v802 = vsel %vm472, %v453, -inf
        %v803 = vrot.slane %v802, 4
        %v804 = vmax.f32 %v802, %v803
        %v805 = vrot.slane %v804, 2
        %v806 = vmax.f32 %v804, %v805
        %v807 = vrot.slane %v806, 1
        %v808 = vmax.f32 %v806, %v807
        %v809 = vsel %vm472, %v454, -inf
        %v810 = vrot.slane %v809, 4
        %v811 = vmax.f32 %v809, %v810
        %v812 = vrot.slane %v811, 2
        %v813 = vmax.f32 %v811, %v812
        %v814 = vrot.slane %v813, 1
        %v815 = vmax.f32 %v813, %v814
        %v816 = vsel %vm472, %v455, -inf
        %v817 = vrot.slane %v816, 4
        %v818 = vmax.f32 %v816, %v817
        %v819 = vrot.slane %v818, 2
        %v820 = vmax.f32 %v818, %v819
        %v821 = vrot.slane %v820, 1
        %v822 = vmax.f32 %v820, %v821
        %v823 = vsel %vm472, %v456, -inf
        %v824 = vrot.slane %v823, 4
        %v825 = vmax.f32 %v823, %v824
        %v826 = vrot.slane %v825, 2
        %v827 = vmax.f32 %v825, %v826
        %v828 = vrot.slane %v827, 1
        %v829 = vmax.f32 %v827, %v828
        %v830 = vsel %vm472, %v457, -inf
        %v831 = vrot.slane %v830, 4
        %v832 = vmax.f32 %v830, %v831
        %v833 = vrot.slane %v832, 2
        %v834 = vmax.f32 %v832, %v833
        %v835 = vrot.slane %v834, 1
        %v836 = vmax.f32 %v834, %v835
        %v837 = vsel %vm472, %v458, -inf
        %v838 = vrot.slane %v837, 4
        %v839 = vmax.f32 %v837, %v838
        %v840 = vrot.slane %v839, 2
        %v841 = vmax.f32 %v839, %v840
        %v842 = vrot.slane %v841, 1
        %v843 = vmax.f32 %v841, %v842
        %v844 = vsel %vm472, %v459, -inf
        %v845 = vrot.slane %v844, 4
        %v846 = vmax.f32 %v844, %v845
        %v847 = vrot.slane %v846, 2
        %v848 = vmax.f32 %v846, %v847
        %v849 = vrot.slane %v848, 1
        %v850 = vmax.f32 %v848, %v849
        %v851 = vsel %vm472, %v460, -inf
        %v852 = vrot.slane %v851, 4
        %v853 = vmax.f32 %v851, %v852
        %v854 = vrot.slane %v853, 2
        %v855 = vmax.f32 %v853, %v854
        %v856 = vrot.slane %v855, 1
        %v857 = vmax.f32 %v855, %v856
        %v858 = vsel %vm472, %v461, -inf
        %v859 = vrot.slane %v858, 4
        %v860 = vmax.f32 %v858, %v859
        %v861 = vrot.slane %v860, 2
        %v862 = vmax.f32 %v860, %v861
        %v863 = vrot.slane %v862, 1
        %v864 = vmax.f32 %v862, %v863
        %v865 = vsel %vm472, %v462, -inf
        %v866 = vrot.slane %v865, 4
        %v867 = vmax.f32 %v865, %v866
        %v868 = vrot.slane %v867, 2
        %v869 = vmax.f32 %v867, %v868
        %v870 = vrot.slane %v869, 1
        %v871 = vmax.f32 %v869, %v870
        %v872 = vsel %vm472, %v463, -inf
        %v873 = vrot.slane %v872, 4
        %v874 = vmax.f32 %v872, %v873
        %v875 = vrot.slane %v874, 2
        %v876 = vmax.f32 %v874, %v875
        %v877 = vrot.slane %v876, 1
        %v878 = vmax.f32 %v876, %v877
        %v879 = vsel %vm472, %v464, -inf
        %v880 = vrot.slane %v879, 4
        %v881 = vmax.f32 %v879, %v880
        %v882 = vrot.slane %v881, 2
        %v883 = vmax.f32 %v881, %v882
        %v884 = vrot.slane %v883, 1
        %v885 = vmax.f32 %v883, %v884
        %v886 = vsel %vm472, %v465, -inf
        %v887 = vrot.slane %v886, 4
        %v888 = vmax.f32 %v886, %v887
        %v889 = vrot.slane %v888, 2
        %v890 = vmax.f32 %v888, %v889
        %v891 = vrot.slane %v890, 1
        %v892 = vmax.f32 %v890, %v891
        %v893 = vsel %vm472, %v466, -inf
        %v894 = vrot.slane %v893, 4
        %v895 = vmax.f32 %v893, %v894
        %v896 = vrot.slane %v895, 2
        %v897 = vmax.f32 %v895, %v896
        %v898 = vrot.slane %v897, 1
        %v899 = vmax.f32 %v897, %v898
        %v900 = vsel %vm472, %v467, -inf
        %v901 = vrot.slane %v900, 4
        %v902 = vmax.f32 %v900, %v901
        %v903 = vrot.slane %v902, 2
        %v904 = vmax.f32 %v902, %v903
        %v905 = vrot.slane %v904, 1
        %v906 = vmax.f32 %v904, %v905
        %v907 = vsel %vm472, %v468, -inf
        %v908 = vrot.slane %v907, 4
        %v909 = vmax.f32 %v907, %v908
        %v910 = vrot.slane %v909, 2
        %v911 = vmax.f32 %v909, %v910
        %v912 = vrot.slane %v911, 1
        %v913 = vmax.f32 %v911, %v912
        %v914 = vsel %vm472, %v469, -inf
        %v915 = vrot.slane %v914, 4
        %v916 = vmax.f32 %v914, %v915
        %v917 = vrot.slane %v916, 2
        %v918 = vmax.f32 %v916, %v917
        %v919 = vrot.slane %v918, 1
        %v920 = vmax.f32 %v918, %v919
        %v921 = vld [vmem:[#allocation6] sm:$0xff]
        %v922 = vld [vmem:[#allocation6 + $0x8] sm:$0x3]
        %v925 = vrot.slane %v921, 1
        %v926 = vrot.slane %v921, 2
        %v927 = vrot.slane %v921, 3
        %v928 = vrot.slane %v921, 4
        %v929 = vrot.slane %v921, 5
        %v930 = vrot.slane %v921, 6
        %v931 = vrot.slane %v921, 7
        %v932 = vrot.slane %v922, 1
        %v933 = vperm.slane %v921, 0
        %v934 = vperm.slane %v925, 0
        %v935 = vperm.slane %v926, 0
        %v936 = vperm.slane %v927, 0
        %v937 = vperm.slane %v928, 0
        %v938 = vperm.slane %v929, 0
        %v939 = vperm.slane %v930, 0
        %v940 = vperm.slane %v931, 0
        %v941 = vperm.slane %v922, 0
        %v942 = vperm.slane %v932, 0
        %vm985 = vcmask 1041409
        %v986 = vsel %vm985, %v486, %v479
        %vm987 = vcmask 1042434
        %v988 = vsel %vm987, %v493, %v986
        %vm989 = vcmask 1043459
        %v990 = vsel %vm989, %v500, %v988
        %vm991 = vcmask 1044484
        %v992 = vsel %vm991, %v507, %v990
        %vm993 = vcmask 1045509
        %v994 = vsel %vm993, %v514, %v992
        %vm995 = vcmask 1046534
        %v996 = vsel %vm995, %v521, %v994
        %vm997 = vcmask 1047559
        %v998 = vsel %vm997, %v528, %v996
        %v999 = vsel %vm985, %v542, %v535
        %v1000 = vsel %vm987, %v549, %v999
        %v1001 = vsel %vm989, %v556, %v1000
        %v1002 = vsel %vm991, %v563, %v1001
        %v1003 = vsel %vm993, %v570, %v1002
        %v1004 = vsel %vm995, %v577, %v1003
        %v1005 = vsel %vm997, %v584, %v1004
        %v1006 = vsel %vm985, %v598, %v591
        %v1007 = vsel %vm987, %v605, %v1006
        %v1008 = vsel %vm989, %v612, %v1007
        %v1009 = vsel %vm991, %v619, %v1008
        %v1010 = vsel %vm993, %v626, %v1009
        %v1011 = vsel %vm995, %v633, %v1010
        %v1012 = vsel %vm997, %v640, %v1011
        %v1013 = vsel %vm985, %v654, %v647
        %v1014 = vsel %vm987, %v661, %v1013
        %v1015 = vsel %vm989, %v668, %v1014
        %v1016 = vsel %vm991, %v675, %v1015
        %v1017 = vsel %vm993, %v682, %v1016
        %v1018 = vsel %vm995, %v689, %v1017
        %v1019 = vsel %vm997, %v696, %v1018
        %v1024 = vmul.f32 %v933, %v998
        %v1025 = vmul.f32 %v933, %v1005
        %v1026 = vmul.f32 %v933, %v1012
        %v1027 = vmul.f32 %v933, %v1019
        %v1028 = vmul.f32 %v934, %v998
        %v1029 = vmul.f32 %v934, %v1005
        %v1030 = vmul.f32 %v934, %v1012
        %v1031 = vmul.f32 %v934, %v1019
        %v1032 = vmul.f32 %v935, %v998
        %v1033 = vmul.f32 %v935, %v1005
        %v1034 = vmul.f32 %v935, %v1012
        %v1035 = vmul.f32 %v935, %v1019
        %v1036 = vmul.f32 %v936, %v998
        %v1037 = vmul.f32 %v936, %v1005
        %v1038 = vmul.f32 %v936, %v1012
        %v1039 = vmul.f32 %v936, %v1019
        %v1040 = vmul.f32 %v937, %v998
        %v1041 = vmul.f32 %v937, %v1005
        %v1042 = vmul.f32 %v937, %v1012
        %v1043 = vmul.f32 %v937, %v1019
        %v1044 = vmul.f32 %v938, %v998
        %v1045 = vmul.f32 %v938, %v1005
        %v1046 = vmul.f32 %v938, %v1012
        %v1047 = vmul.f32 %v938, %v1019
        %v1048 = vmul.f32 %v939, %v998
        %v1049 = vmul.f32 %v939, %v1005
        %v1050 = vmul.f32 %v939, %v1012
        %v1051 = vmul.f32 %v939, %v1019
        %v1052 = vmul.f32 %v940, %v998
        %v1053 = vmul.f32 %v940, %v1005
        %v1054 = vmul.f32 %v940, %v1012
        %v1055 = vmul.f32 %v940, %v1019
        %v1056 = vmul.f32 %v941, %v998
        %v1057 = vmul.f32 %v941, %v1005
        %v1058 = vmul.f32 %v941, %v1012
        %v1059 = vmul.f32 %v941, %v1019
        %v1060 = vmul.f32 %v942, %v998
        %v1061 = vmul.f32 %v942, %v1005
        %v1062 = vmul.f32 %v942, %v1012
        %v1063 = vmul.f32 %v942, %v1019
        %v1064 = vsel %vm472, %v1024, 0.0
        %1065 = vadd.xlane.f32.xlu0 %v1064
        %v1066 = vpop.xlane.xlu0 %1065
        %v1067 = vsel %vm472, %v1025, 0.0
        %1068 = vadd.xlane.f32.xlu0 %v1067
        %v1069 = vpop.xlane.xlu0 %1068
        %v1070 = vsel %vm472, %v1026, 0.0
        %1071 = vadd.xlane.f32.xlu0 %v1070
        %v1072 = vpop.xlane.xlu0 %1071
        %v1073 = vsel %vm472, %v1027, 0.0
        %1074 = vadd.xlane.f32.xlu0 %v1073
        %v1075 = vpop.xlane.xlu0 %1074
        %v1076 = vsel %vm472, %v1028, 0.0
        %1077 = vadd.xlane.f32.xlu0 %v1076
        %v1078 = vpop.xlane.xlu0 %1077
        %v1079 = vsel %vm472, %v1029, 0.0
        %1080 = vadd.xlane.f32.xlu0 %v1079
        %v1081 = vpop.xlane.xlu0 %1080
        %v1082 = vsel %vm472, %v1030, 0.0
        %1083 = vadd.xlane.f32.xlu0 %v1082
        %v1084 = vpop.xlane.xlu0 %1083
        %v1085 = vsel %vm472, %v1031, 0.0
        %1086 = vadd.xlane.f32.xlu0 %v1085
        %v1087 = vpop.xlane.xlu0 %1086
        %v1088 = vsel %vm472, %v1032, 0.0
        %1089 = vadd.xlane.f32.xlu0 %v1088
        %v1090 = vpop.xlane.xlu0 %1089
        %v1091 = vsel %vm472, %v1033, 0.0
        %1092 = vadd.xlane.f32.xlu0 %v1091
        %v1093 = vpop.xlane.xlu0 %1092
        %v1094 = vsel %vm472, %v1034, 0.0
        %1095 = vadd.xlane.f32.xlu0 %v1094
        %v1096 = vpop.xlane.xlu0 %1095
        %v1097 = vsel %vm472, %v1035, 0.0
        %1098 = vadd.xlane.f32.xlu0 %v1097
        %v1099 = vpop.xlane.xlu0 %1098
        %v1100 = vsel %vm472, %v1036, 0.0
        %1101 = vadd.xlane.f32.xlu0 %v1100
        %v1102 = vpop.xlane.xlu0 %1101
        %v1103 = vsel %vm472, %v1037, 0.0
        %1104 = vadd.xlane.f32.xlu0 %v1103
        %v1105 = vpop.xlane.xlu0 %1104
        %v1106 = vsel %vm472, %v1038, 0.0
        %1107 = vadd.xlane.f32.xlu0 %v1106
        %v1108 = vpop.xlane.xlu0 %1107
        %v1109 = vsel %vm472, %v1039, 0.0
        %1110 = vadd.xlane.f32.xlu0 %v1109
        %v1111 = vpop.xlane.xlu0 %1110
        %v1112 = vsel %vm472, %v1040, 0.0
        %1113 = vadd.xlane.f32.xlu0 %v1112
        %v1114 = vpop.xlane.xlu0 %1113
        %v1115 = vsel %vm472, %v1041, 0.0
        %1116 = vadd.xlane.f32.xlu0 %v1115
        %v1117 = vpop.xlane.xlu0 %1116
        %v1118 = vsel %vm472, %v1042, 0.0
        %1119 = vadd.xlane.f32.xlu0 %v1118
        %v1120 = vpop.xlane.xlu0 %1119
        %v1121 = vsel %vm472, %v1043, 0.0
        %1122 = vadd.xlane.f32.xlu0 %v1121
        %v1123 = vpop.xlane.xlu0 %1122
        %v1124 = vsel %vm472, %v1044, 0.0
        %1125 = vadd.xlane.f32.xlu0 %v1124
        %v1126 = vpop.xlane.xlu0 %1125
        %v1127 = vsel %vm472, %v1045, 0.0
        %1128 = vadd.xlane.f32.xlu0 %v1127
        %v1129 = vpop.xlane.xlu0 %1128
        %v1130 = vsel %vm472, %v1046, 0.0
        %1131 = vadd.xlane.f32.xlu0 %v1130
        %v1132 = vpop.xlane.xlu0 %1131
        %v1133 = vsel %vm472, %v1047, 0.0
        %1134 = vadd.xlane.f32.xlu0 %v1133
        %v1135 = vpop.xlane.xlu0 %1134
        %v1136 = vsel %vm472, %v1048, 0.0
        %1137 = vadd.xlane.f32.xlu0 %v1136
        %v1138 = vpop.xlane.xlu0 %1137
        %v1139 = vsel %vm472, %v1049, 0.0
        %1140 = vadd.xlane.f32.xlu0 %v1139
        %v1141 = vpop.xlane.xlu0 %1140
        %v1142 = vsel %vm472, %v1050, 0.0
        %1143 = vadd.xlane.f32.xlu0 %v1142
        %v1144 = vpop.xlane.xlu0 %1143
        %v1145 = vsel %vm472, %v1051, 0.0
        %1146 = vadd.xlane.f32.xlu0 %v1145
        %v1147 = vpop.xlane.xlu0 %1146
        %v1148 = vsel %vm472, %v1052, 0.0
        %1149 = vadd.xlane.f32.xlu0 %v1148
        %v1150 = vpop.xlane.xlu0 %1149
        %v1151 = vsel %vm472, %v1053, 0.0
        %1152 = vadd.xlane.f32.xlu0 %v1151
        %v1153 = vpop.xlane.xlu0 %1152
        %v1154 = vsel %vm472, %v1054, 0.0
        %1155 = vadd.xlane.f32.xlu0 %v1154
        %v1156 = vpop.xlane.xlu0 %1155
        %v1157 = vsel %vm472, %v1055, 0.0
        %1158 = vadd.xlane.f32.xlu0 %v1157
        %v1159 = vpop.xlane.xlu0 %1158
        %v1160 = vsel %vm472, %v1056, 0.0
        %1161 = vadd.xlane.f32.xlu0 %v1160
        %v1162 = vpop.xlane.xlu0 %1161
        %v1163 = vsel %vm472, %v1057, 0.0
        %1164 = vadd.xlane.f32.xlu0 %v1163
        %v1165 = vpop.xlane.xlu0 %1164
        %v1166 = vsel %vm472, %v1058, 0.0
        %1167 = vadd.xlane.f32.xlu0 %v1166
        %v1168 = vpop.xlane.xlu0 %1167
        %v1169 = vsel %vm472, %v1059, 0.0
        %1170 = vadd.xlane.f32.xlu0 %v1169
        %v1171 = vpop.xlane.xlu0 %1170
        %v1172 = vsel %vm472, %v1060, 0.0
        %1173 = vadd.xlane.f32.xlu0 %v1172
        %v1174 = vpop.xlane.xlu0 %1173
        %v1175 = vsel %vm472, %v1061, 0.0
        %1176 = vadd.xlane.f32.xlu0 %v1175
        %v1177 = vpop.xlane.xlu0 %1176
        %v1178 = vsel %vm472, %v1062, 0.0
        %1179 = vadd.xlane.f32.xlu0 %v1178
        %v1180 = vpop.xlane.xlu0 %1179
        %v1181 = vsel %vm472, %v1063, 0.0
        %1182 = vadd.xlane.f32.xlu0 %v1181
        %v1183 = vpop.xlane.xlu0 %1182
        %v1186 = vrot.slane %v470, 1
        %v1187 = vrot.slane %v470, 2
        %v1188 = vrot.slane %v470, 3
        %v1189 = vrot.slane %v470, 4
        %v1190 = vrot.slane %v470, 5
        %v1191 = vrot.slane %v470, 6
        %v1192 = vrot.slane %v470, 7
        %v1193 = vrot.slane %v471, 1
        %vm1202 = vcmp.gt.f32.partialorder %v470, 0.5
        %vm1203 = vcmp.gt.f32.partialorder %v1186, 0.5
        %vm1204 = vcmp.gt.f32.partialorder %v1187, 0.5
        %vm1205 = vcmp.gt.f32.partialorder %v1188, 0.5
        %vm1206 = vcmp.gt.f32.partialorder %v1189, 0.5
        %vm1207 = vcmp.gt.f32.partialorder %v1190, 0.5
        %vm1208 = vcmp.gt.f32.partialorder %v1191, 0.5
        %vm1209 = vcmp.gt.f32.partialorder %v1192, 0.5
        %vm1210 = vcmp.gt.f32.partialorder %v471, 0.5
        %vm1211 = vcmp.gt.f32.partialorder %v1193, 0.5
        %v1212 = vsel %vm1202, 1, 0
        %v1213 = vsel %vm1203, 1, 0
        %v1214 = vsel %vm1204, 1, 0
        %v1215 = vsel %vm1205, 1, 0
        %v1216 = vsel %vm1206, 1, 0
        %v1217 = vsel %vm1207, 1, 0
        %v1218 = vsel %vm1208, 1, 0
        %v1219 = vsel %vm1209, 1, 0
        %v1220 = vsel %vm1210, 1, 0
        %v1221 = vsel %vm1211, 1, 0
        %v1222 = vperm.slane %v1212, 0
        %v1223 = vperm.slane %v1213, 0
        %v1224 = vperm.slane %v1214, 0
        %v1225 = vperm.slane %v1215, 0
        %v1226 = vperm.slane %v1216, 0
        %v1227 = vperm.slane %v1217, 0
        %v1228 = vperm.slane %v1218, 0
        %v1229 = vperm.slane %v1219, 0
        %v1230 = vperm.slane %v1220, 0
        %v1231 = vperm.slane %v1221, 0
        %vm1232 = vcmp.eq.s32.totalorder %v1222, 1
        %vm1233 = vcmp.eq.s32.totalorder %v1223, 1
        %vm1234 = vcmp.eq.s32.totalorder %v1224, 1
        %vm1235 = vcmp.eq.s32.totalorder %v1225, 1
        %vm1236 = vcmp.eq.s32.totalorder %v1226, 1
        %vm1237 = vcmp.eq.s32.totalorder %v1227, 1
        %vm1238 = vcmp.eq.s32.totalorder %v1228, 1
        %vm1239 = vcmp.eq.s32.totalorder %v1229, 1
        %vm1240 = vcmp.eq.s32.totalorder %v1230, 1
        %vm1241 = vcmp.eq.s32.totalorder %v1231, 1
        %v1274 = vsel %vm985, %v710, %v703
        %v1275 = vsel %vm987, %v717, %v1274
        %v1276 = vsel %vm989, %v724, %v1275
        %v1277 = vsel %vm991, %v731, %v1276
        %v1278 = vsel %vm993, %v738, %v1277
        %v1279 = vsel %vm995, %v745, %v1278
        %v1280 = vsel %vm997, %v752, %v1279
        %v1281 = vsel %vm985, %v766, %v759
        %v1282 = vsel %vm987, %v773, %v1281
        %v1283 = vsel %vm989, %v780, %v1282
        %v1284 = vsel %vm991, %v787, %v1283
        %v1285 = vsel %vm993, %v794, %v1284
        %v1286 = vsel %vm995, %v801, %v1285
        %v1287 = vsel %vm997, %v808, %v1286
        %v1288 = vsel %vm985, %v822, %v815
        %v1289 = vsel %vm987, %v829, %v1288
        %v1290 = vsel %vm989, %v836, %v1289
        %v1291 = vsel %vm991, %v843, %v1290
        %v1292 = vsel %vm993, %v850, %v1291
        %v1293 = vsel %vm995, %v857, %v1292
        %v1294 = vsel %vm997, %v864, %v1293
        %v1295 = vsel %vm985, %v878, %v871
        %v1296 = vsel %vm987, %v885, %v1295
        %v1297 = vsel %vm989, %v892, %v1296
        %v1298 = vsel %vm991, %v899, %v1297
        %v1299 = vsel %vm993, %v906, %v1298
        %v1300 = vsel %vm995, %v913, %v1299
        %v1301 = vsel %vm997, %v920, %v1300
        %v1306 = vsel %vm1232, %v1280, -inf
        %v1307 = vsel %vm1232, %v1287, -inf
        %v1308 = vsel %vm1232, %v1294, -inf
        %v1309 = vsel %vm1232, %v1301, -inf
        %v1310 = vsel %vm1233, %v1280, -inf
        %v1311 = vsel %vm1233, %v1287, -inf
        %v1312 = vsel %vm1233, %v1294, -inf
        %v1313 = vsel %vm1233, %v1301, -inf
        %v1314 = vsel %vm1234, %v1280, -inf
        %v1315 = vsel %vm1234, %v1287, -inf
        %v1316 = vsel %vm1234, %v1294, -inf
        %v1317 = vsel %vm1234, %v1301, -inf
        %v1318 = vsel %vm1235, %v1280, -inf
        %v1319 = vsel %vm1235, %v1287, -inf
        %v1320 = vsel %vm1235, %v1294, -inf
        %v1321 = vsel %vm1235, %v1301, -inf
        %v1322 = vsel %vm1236, %v1280, -inf
        %v1323 = vsel %vm1236, %v1287, -inf
        %v1324 = vsel %vm1236, %v1294, -inf
        %v1325 = vsel %vm1236, %v1301, -inf
        %v1326 = vsel %vm1237, %v1280, -inf
        %v1327 = vsel %vm1237, %v1287, -inf
        %v1328 = vsel %vm1237, %v1294, -inf
        %v1329 = vsel %vm1237, %v1301, -inf
        %v1330 = vsel %vm1238, %v1280, -inf
        %v1331 = vsel %vm1238, %v1287, -inf
        %v1332 = vsel %vm1238, %v1294, -inf
        %v1333 = vsel %vm1238, %v1301, -inf
        %v1334 = vsel %vm1239, %v1280, -inf
        %v1335 = vsel %vm1239, %v1287, -inf
        %v1336 = vsel %vm1239, %v1294, -inf
        %v1337 = vsel %vm1239, %v1301, -inf
        %v1338 = vsel %vm1240, %v1280, -inf
        %v1339 = vsel %vm1240, %v1287, -inf
        %v1340 = vsel %vm1240, %v1294, -inf
        %v1341 = vsel %vm1240, %v1301, -inf
        %v1342 = vsel %vm1241, %v1280, -inf
        %v1343 = vsel %vm1241, %v1287, -inf
        %v1344 = vsel %vm1241, %v1294, -inf
        %v1345 = vsel %vm1241, %v1301, -inf
        %v1346 = vsel %vm472, %v1306, -inf
        %1347 = vmax.xlane.f32.xlu0 %v1346
        %v1348 = vpop.xlane.xlu0 %1347
        %v1349 = vsel %vm472, %v1307, -inf
        %1350 = vmax.xlane.f32.xlu0 %v1349
        %v1351 = vpop.xlane.xlu0 %1350
        %v1352 = vsel %vm472, %v1308, -inf
        %1353 = vmax.xlane.f32.xlu0 %v1352
        %v1354 = vpop.xlane.xlu0 %1353
        %v1355 = vsel %vm472, %v1309, -inf
        %1356 = vmax.xlane.f32.xlu0 %v1355
        %v1357 = vpop.xlane.xlu0 %1356
        %v1358 = vsel %vm472, %v1310, -inf
        %1359 = vmax.xlane.f32.xlu0 %v1358
        %v1360 = vpop.xlane.xlu0 %1359
        %v1361 = vsel %vm472, %v1311, -inf
        %1362 = vmax.xlane.f32.xlu0 %v1361
        %v1363 = vpop.xlane.xlu0 %1362
        %v1364 = vsel %vm472, %v1312, -inf
        %1365 = vmax.xlane.f32.xlu0 %v1364
        %v1366 = vpop.xlane.xlu0 %1365
        %v1367 = vsel %vm472, %v1313, -inf
        %1368 = vmax.xlane.f32.xlu0 %v1367
        %v1369 = vpop.xlane.xlu0 %1368
        %v1370 = vsel %vm472, %v1314, -inf
        %1371 = vmax.xlane.f32.xlu0 %v1370
        %v1372 = vpop.xlane.xlu0 %1371
        %v1373 = vsel %vm472, %v1315, -inf
        %1374 = vmax.xlane.f32.xlu0 %v1373
        %v1375 = vpop.xlane.xlu0 %1374
        %v1376 = vsel %vm472, %v1316, -inf
        %1377 = vmax.xlane.f32.xlu0 %v1376
        %v1378 = vpop.xlane.xlu0 %1377
        %v1379 = vsel %vm472, %v1317, -inf
        %1380 = vmax.xlane.f32.xlu0 %v1379
        %v1381 = vpop.xlane.xlu0 %1380
        %v1382 = vsel %vm472, %v1318, -inf
        %1383 = vmax.xlane.f32.xlu0 %v1382
        %v1384 = vpop.xlane.xlu0 %1383
        %v1385 = vsel %vm472, %v1319, -inf
        %1386 = vmax.xlane.f32.xlu0 %v1385
        %v1387 = vpop.xlane.xlu0 %1386
        %v1388 = vsel %vm472, %v1320, -inf
        %1389 = vmax.xlane.f32.xlu0 %v1388
        %v1390 = vpop.xlane.xlu0 %1389
        %v1391 = vsel %vm472, %v1321, -inf
        %1392 = vmax.xlane.f32.xlu0 %v1391
        %v1393 = vpop.xlane.xlu0 %1392
        %v1394 = vsel %vm472, %v1322, -inf
        %1395 = vmax.xlane.f32.xlu0 %v1394
        %v1396 = vpop.xlane.xlu0 %1395
        %v1397 = vsel %vm472, %v1323, -inf
        %1398 = vmax.xlane.f32.xlu0 %v1397
        %v1399 = vpop.xlane.xlu0 %1398
        %v1400 = vsel %vm472, %v1324, -inf
        %1401 = vmax.xlane.f32.xlu0 %v1400
        %v1402 = vpop.xlane.xlu0 %1401
        %v1403 = vsel %vm472, %v1325, -inf
        %1404 = vmax.xlane.f32.xlu0 %v1403
        %v1405 = vpop.xlane.xlu0 %1404
        %v1406 = vsel %vm472, %v1326, -inf
        %1407 = vmax.xlane.f32.xlu0 %v1406
        %v1408 = vpop.xlane.xlu0 %1407
        %v1409 = vsel %vm472, %v1327, -inf
        %1410 = vmax.xlane.f32.xlu0 %v1409
        %v1411 = vpop.xlane.xlu0 %1410
        %v1412 = vsel %vm472, %v1328, -inf
        %1413 = vmax.xlane.f32.xlu0 %v1412
        %v1414 = vpop.xlane.xlu0 %1413
        %v1415 = vsel %vm472, %v1329, -inf
        %1416 = vmax.xlane.f32.xlu0 %v1415
        %v1417 = vpop.xlane.xlu0 %1416
        %v1418 = vsel %vm472, %v1330, -inf
        %1419 = vmax.xlane.f32.xlu0 %v1418
        %v1420 = vpop.xlane.xlu0 %1419
        %v1421 = vsel %vm472, %v1331, -inf
        %1422 = vmax.xlane.f32.xlu0 %v1421
        %v1423 = vpop.xlane.xlu0 %1422
        %v1424 = vsel %vm472, %v1332, -inf
        %1425 = vmax.xlane.f32.xlu0 %v1424
        %v1426 = vpop.xlane.xlu0 %1425
        %v1427 = vsel %vm472, %v1333, -inf
        %1428 = vmax.xlane.f32.xlu0 %v1427
        %v1429 = vpop.xlane.xlu0 %1428
        %v1430 = vsel %vm472, %v1334, -inf
        %1431 = vmax.xlane.f32.xlu0 %v1430
        %v1432 = vpop.xlane.xlu0 %1431
        %v1433 = vsel %vm472, %v1335, -inf
        %1434 = vmax.xlane.f32.xlu0 %v1433
        %v1435 = vpop.xlane.xlu0 %1434
        %v1436 = vsel %vm472, %v1336, -inf
        %1437 = vmax.xlane.f32.xlu0 %v1436
        %v1438 = vpop.xlane.xlu0 %1437
        %v1439 = vsel %vm472, %v1337, -inf
        %1440 = vmax.xlane.f32.xlu0 %v1439
        %v1441 = vpop.xlane.xlu0 %1440
        %v1442 = vsel %vm472, %v1338, -inf
        %1443 = vmax.xlane.f32.xlu0 %v1442
        %v1444 = vpop.xlane.xlu0 %1443
        %v1445 = vsel %vm472, %v1339, -inf
        %1446 = vmax.xlane.f32.xlu0 %v1445
        %v1447 = vpop.xlane.xlu0 %1446
        %v1448 = vsel %vm472, %v1340, -inf
        %1449 = vmax.xlane.f32.xlu0 %v1448
        %v1450 = vpop.xlane.xlu0 %1449
        %v1451 = vsel %vm472, %v1341, -inf
        %1452 = vmax.xlane.f32.xlu0 %v1451
        %v1453 = vpop.xlane.xlu0 %1452
        %v1454 = vsel %vm472, %v1342, -inf
        %1455 = vmax.xlane.f32.xlu0 %v1454
        %v1456 = vpop.xlane.xlu0 %1455
        %v1457 = vsel %vm472, %v1343, -inf
        %1458 = vmax.xlane.f32.xlu0 %v1457
        %v1459 = vpop.xlane.xlu0 %1458
        %v1460 = vsel %vm472, %v1344, -inf
        %1461 = vmax.xlane.f32.xlu0 %v1460
        %v1462 = vpop.xlane.xlu0 %1461
        %v1463 = vsel %vm472, %v1345, -inf
        %1464 = vmax.xlane.f32.xlu0 %v1463
        %v1465 = vpop.xlane.xlu0 %1464
        %v1506 = vlaneseq
        %v1507 = vand.u32 %v1506, 127
        %v1508 = vperm.slane %v1066, %v1507
        %v1509 = vadd.s32 %v1507, 4294967288
        %v1510 = vperm.slane %v1069, %v1509
        %vm1511 = vcmask 130112
        %v1512 = vsel %vm1511, %v1510, %v1508
        %v1513 = vadd.s32 %v1507, 4294967280
        %v1514 = vperm.slane %v1072, %v1513
        %vm1515 = vcmask 195712
        %v1516 = vsel %vm1515, %v1514, %v1512
        %v1517 = vadd.s32 %v1507, 4294967272
        %v1518 = vperm.slane %v1075, %v1517
        %vm1519 = vcmask 261312
        %v1520 = vsel %vm1519, %v1518, %v1516
        %v1521 = vperm.slane %v1078, %v1507
        %v1522 = vperm.slane %v1081, %v1509
        %v1523 = vsel %vm1511, %v1522, %v1521
        %v1524 = vperm.slane %v1084, %v1513
        %v1525 = vsel %vm1515, %v1524, %v1523
        %v1526 = vperm.slane %v1087, %v1517
        %v1527 = vsel %vm1519, %v1526, %v1525
        %v1528 = vperm.slane %v1090, %v1507
        %v1529 = vperm.slane %v1093, %v1509
        %v1530 = vsel %vm1511, %v1529, %v1528
        %v1531 = vperm.slane %v1096, %v1513
        %v1532 = vsel %vm1515, %v1531, %v1530
        %v1533 = vperm.slane %v1099, %v1517
        %v1534 = vsel %vm1519, %v1533, %v1532
        %v1535 = vperm.slane %v1102, %v1507
        %v1536 = vperm.slane %v1105, %v1509
        %v1537 = vsel %vm1511, %v1536, %v1535
        %v1538 = vperm.slane %v1108, %v1513
        %v1539 = vsel %vm1515, %v1538, %v1537
        %v1540 = vperm.slane %v1111, %v1517
        %v1541 = vsel %vm1519, %v1540, %v1539
        %v1542 = vperm.slane %v1114, %v1507
        %v1543 = vperm.slane %v1117, %v1509
        %v1544 = vsel %vm1511, %v1543, %v1542
        %v1545 = vperm.slane %v1120, %v1513
        %v1546 = vsel %vm1515, %v1545, %v1544
        %v1547 = vperm.slane %v1123, %v1517
        %v1548 = vsel %vm1519, %v1547, %v1546
        %v1549 = vperm.slane %v1126, %v1507
        %v1550 = vperm.slane %v1129, %v1509
        %v1551 = vsel %vm1511, %v1550, %v1549
        %v1552 = vperm.slane %v1132, %v1513
        %v1553 = vsel %vm1515, %v1552, %v1551
        %v1554 = vperm.slane %v1135, %v1517
        %v1555 = vsel %vm1519, %v1554, %v1553
        %v1556 = vperm.slane %v1138, %v1507
        %v1557 = vperm.slane %v1141, %v1509
        %v1558 = vsel %vm1511, %v1557, %v1556
        %v1559 = vperm.slane %v1144, %v1513
        %v1560 = vsel %vm1515, %v1559, %v1558
        %v1561 = vperm.slane %v1147, %v1517
        %v1562 = vsel %vm1519, %v1561, %v1560
        %v1563 = vperm.slane %v1150, %v1507
        %v1564 = vperm.slane %v1153, %v1509
        %v1565 = vsel %vm1511, %v1564, %v1563
        %v1566 = vperm.slane %v1156, %v1513
        %v1567 = vsel %vm1515, %v1566, %v1565
        %v1568 = vperm.slane %v1159, %v1517
        %v1569 = vsel %vm1519, %v1568, %v1567
        %v1570 = vperm.slane %v1162, %v1507
        %v1571 = vperm.slane %v1165, %v1509
        %v1572 = vsel %vm1511, %v1571, %v1570
        %v1573 = vperm.slane %v1168, %v1513
        %v1574 = vsel %vm1515, %v1573, %v1572
        %v1575 = vperm.slane %v1171, %v1517
        %v1576 = vsel %vm1519, %v1575, %v1574
        %v1577 = vperm.slane %v1174, %v1507
        %v1578 = vperm.slane %v1177, %v1509
        %v1579 = vsel %vm1511, %v1578, %v1577
        %v1580 = vperm.slane %v1180, %v1513
        %v1581 = vsel %vm1515, %v1580, %v1579
        %v1582 = vperm.slane %v1183, %v1517
        %v1583 = vsel %vm1519, %v1582, %v1581
        %v1584 = vsel %vm985, %v1527, %v1520
        %v1585 = vsel %vm987, %v1534, %v1584
        %v1586 = vsel %vm989, %v1541, %v1585
        %v1587 = vsel %vm991, %v1548, %v1586
        %v1588 = vsel %vm993, %v1555, %v1587
        %v1589 = vsel %vm995, %v1562, %v1588
        %v1590 = vsel %vm997, %v1569, %v1589
        %v1591 = vsel %vm985, %v1583, %v1576
        %v1633 = vperm.slane %v1348, %v1507
        %v1634 = vperm.slane %v1351, %v1509
        %v1635 = vsel %vm1511, %v1634, %v1633
        %v1636 = vperm.slane %v1354, %v1513
        %v1637 = vsel %vm1515, %v1636, %v1635
        %v1638 = vperm.slane %v1357, %v1517
        %v1639 = vsel %vm1519, %v1638, %v1637
        %v1640 = vperm.slane %v1360, %v1507
        %v1641 = vperm.slane %v1363, %v1509
        %v1642 = vsel %vm1511, %v1641, %v1640
        %v1643 = vperm.slane %v1366, %v1513
        %v1644 = vsel %vm1515, %v1643, %v1642
        %v1645 = vperm.slane %v1369, %v1517
        %v1646 = vsel %vm1519, %v1645, %v1644
        %v1647 = vperm.slane %v1372, %v1507
        %v1648 = vperm.slane %v1375, %v1509
        %v1649 = vsel %vm1511, %v1648, %v1647
        %v1650 = vperm.slane %v1378, %v1513
        %v1651 = vsel %vm1515, %v1650, %v1649
        %v1652 = vperm.slane %v1381, %v1517
        %v1653 = vsel %vm1519, %v1652, %v1651
        %v1654 = vperm.slane %v1384, %v1507
        %v1655 = vperm.slane %v1387, %v1509
        %v1656 = vsel %vm1511, %v1655, %v1654
        %v1657 = vperm.slane %v1390, %v1513
        %v1658 = vsel %vm1515, %v1657, %v1656
        %v1659 = vperm.slane %v1393, %v1517
        %v1660 = vsel %vm1519, %v1659, %v1658
        %v1661 = vperm.slane %v1396, %v1507
        %v1662 = vperm.slane %v1399, %v1509
        %v1663 = vsel %vm1511, %v1662, %v1661
        %v1664 = vperm.slane %v1402, %v1513
        %v1665 = vsel %vm1515, %v1664, %v1663
        %v1666 = vperm.slane %v1405, %v1517
        %v1667 = vsel %vm1519, %v1666, %v1665
        %v1668 = vperm.slane %v1408, %v1507
        %v1669 = vperm.slane %v1411, %v1509
        %v1670 = vsel %vm1511, %v1669, %v1668
        %v1671 = vperm.slane %v1414, %v1513
        %v1672 = vsel %vm1515, %v1671, %v1670
        %v1673 = vperm.slane %v1417, %v1517
        %v1674 = vsel %vm1519, %v1673, %v1672
        %v1675 = vperm.slane %v1420, %v1507
        %v1676 = vperm.slane %v1423, %v1509
        %v1677 = vsel %vm1511, %v1676, %v1675
        %v1678 = vperm.slane %v1426, %v1513
        %v1679 = vsel %vm1515, %v1678, %v1677
        %v1680 = vperm.slane %v1429, %v1517
        %v1681 = vsel %vm1519, %v1680, %v1679
        %v1682 = vperm.slane %v1432, %v1507
        %v1683 = vperm.slane %v1435, %v1509
        %v1684 = vsel %vm1511, %v1683, %v1682
        %v1685 = vperm.slane %v1438, %v1513
        %v1686 = vsel %vm1515, %v1685, %v1684
        %v1687 = vperm.slane %v1441, %v1517
        %v1688 = vsel %vm1519, %v1687, %v1686
        %v1689 = vperm.slane %v1444, %v1507
        %v1690 = vperm.slane %v1447, %v1509
        %v1691 = vsel %vm1511, %v1690, %v1689
        %v1692 = vperm.slane %v1450, %v1513
        %v1693 = vsel %vm1515, %v1692, %v1691
        %v1694 = vperm.slane %v1453, %v1517
        %v1695 = vsel %vm1519, %v1694, %v1693
        %v1696 = vperm.slane %v1456, %v1507
        %v1697 = vperm.slane %v1459, %v1509
        %v1698 = vsel %vm1511, %v1697, %v1696
        %v1699 = vperm.slane %v1462, %v1513
        %v1700 = vsel %vm1515, %v1699, %v1698
        %v1701 = vperm.slane %v1465, %v1517
        %v1702 = vsel %vm1519, %v1701, %v1700
        %v1703 = vsel %vm989, %v1646, %v1639
        %v1704 = vsel %vm991, %v1653, %v1703
        %v1705 = vsel %vm993, %v1660, %v1704
        %v1706 = vsel %vm995, %v1667, %v1705
        %v1707 = vsel %vm997, %v1674, %v1706
        %v1708 = vsel %vm985, %v1688, %v1681
        %v1709 = vsel %vm987, %v1695, %v1708
        %v1710 = vsel %vm989, %v1702, %v1709
        %vm1712 = vcmask 1041408
        %v1713 = vsel %vm1712, %v1591, %v1707
        %v1714 = vld [vmem:[%s4] sm:$0xff]
        %v1715 = vld [vmem:[%s4 + $0x8] sm:$0xff]
        %v1716 = vld [vmem:[%s4 + $0x10] sm:$0xff]
        %v1717 = vld [vmem:[%s4 + $0x18] sm:$0xff]
        %v1718 = vld [vmem:[%s5] sm:$0x1]
        %v1720 = vperm.slane %v1718, 0
        %vm1722 = vcmask 261120
        %v1723 = vsel %vm1722, %v1590, 0
        %v1726 = vsel %vm1722, %v1713, 0
        %v1728 = vsel %vm1722, %v1710, 0
        %1730 = vmatpush.msra.mxu0 0.0
        %1731 = vmatpush.msra.mxu0 0.0
        %1732 = vmatpush.msra.mxu0 0.0
        %1733 = vmatpush.msra.mxu0 0.0
        %1734 = vmatpush.msra.mxu0 0.0
        %1735 = vmatpush.msra.mxu0 0.0
        %1736 = vmatpush.msra.mxu0 0.0
        %1737 = vmatpush.msra.mxu0 0.0
        %1738 = vmatpush.msra.mxu0 0.0
        %1739 = vmatpush.msra.mxu0 0.0
        %1740 = vmatpush.msra.mxu0 0.0
        %1741 = vmatpush.msra.mxu0 0.0
        %1742 = vmatpush.msra.mxu0 %v1717
        %1743 = vmatpush.msra.mxu0 %v1716
        %1744 = vmatpush.msra.mxu0 %v1715
        %1745 = vmatpush.msra.mxu0 %v1714
        %1746 = vmatmul.f32.gmra.mxu0 %v1723
        %v1747 = vpop.f32.mrf.mxu0
        %v1748 = vadd.f32 %v1720, %v1747
        %1749 = vmatmul.f32.gmra.mxu0 %v1726
        %v1750 = vpop.f32.mrf.mxu0
        %v1751 = vadd.f32 %v1720, %v1750
        %1752 = vmatmul.f32.gmra.mxu0 %v1728
        %v1753 = vpop.f32.mrf.mxu0
        %v1754 = vadd.f32 %v1720, %v1753
        %1755 = vdwg.mxu0
        %v1756 = vmax.f32 %v1748, 0.0
        %v1757 = vmax.f32 %v1751, 0.0
        %v1758 = vmax.f32 %v1754, 0.0
        %v1759 = vld [vmem:[#allocation7] sm:$0xff]
        %v1760 = vld [vmem:[#allocation7 + $0x8] sm:$0xff]
        %v1761 = vld [vmem:[#allocation7 + $0x10] sm:$0xf]
        %v1762 = vmul.f32 %v1756, %v1759
        %v1763 = vmul.f32 %v1757, %v1760
        %v1764 = vmul.f32 %v1758, %v1761
        %v1765 = vld [vmem:[#allocation9] sm:$0xff]
        %v1766 = vld [vmem:[#allocation9 + $0x8] sm:$0xff]
        %v1767 = vld [vmem:[#allocation9 + $0x10] sm:$0xf]
        %v1768 = vld [vmem:[#allocation10] sm:$0xff]
        %v1769 = vld [vmem:[#allocation10 + $0x8] sm:$0xff]
        %v1770 = vld [vmem:[#allocation10 + $0x10] sm:$0xf]
        %vm1771 = vcmask 162816
        %v1773 = vsel %vm1771, %v1762, 0
        %v1776 = vsel %vm1771, %v1763, 0
        %v1779 = vsel %vm1771, %v1764, 0
        %vm1781 = vcmask 1043456
        %v1783 = vsel %vm1781, %v1767, 0
        %1785 = vmatpush.msra.mxu0 0.0
        %1786 = vmatpush.msra.mxu0 0.0
        %1787 = vmatpush.msra.mxu0 0.0
        %1788 = vmatpush.msra.mxu0 0.0
        %1789 = vmatpush.msra.mxu0 0.0
        %1790 = vmatpush.msra.mxu0 0.0
        %1791 = vmatpush.msra.mxu0 0.0
        %1792 = vmatpush.msra.mxu0 0.0
        %1793 = vmatpush.msra.mxu0 0.0
        %1794 = vmatpush.msra.mxu0 0.0
        %1795 = vmatpush.msra.mxu0 0.0
        %1796 = vmatpush.msra.mxu0 0.0
        %1797 = vmatpush.msra.mxu0 0.0
        %1798 = vmatpush.msra.mxu0 %v1783
        %1799 = vmatpush.msra.mxu0 %v1766
        %1800 = vmatpush.msra.mxu0 %v1765
        %1801 = vmatmul.f32.gmra.mxu0 %v1773
        %v1802 = vpop.f32.mrf.mxu0
        %v1803 = vadd.f32 %v1768, %v1802
        %1804 = vmatmul.f32.gmra.mxu0 %v1776
        %v1805 = vpop.f32.mrf.mxu0
        %v1806 = vadd.f32 %v1769, %v1805
        %1807 = vmatmul.f32.gmra.mxu0 %v1779
        %v1808 = vpop.f32.mrf.mxu0
        %v1809 = vadd.f32 %v1770, %v1808
        %1810 = vdwg.mxu0
        %vm1813 = vcmask 1045504
        %v1814 = vrot.slane %v1806, 2
        %v1815 = vrot.slane %v1809, 2
        %v1816 = vsel %vm1813, %v1814, %v1815
        %v1819 = vadd.f32 %v1803, %v1816
        %v1820 = vadd.f32 %v1806, %v1815
        %v1821 = vxor.u32 %v1819, 2147483648
        %v1822 = vxor.u32 %v1820, 2147483648
        %v1823 = vmul.f32 %v1821, 1.442695
        %v1824 = vpow.pop %v1823
        %v1825 = vmul.f32 %v1822, 1.442695
        %v1826 = vpow.pop %v1825
        %v1827 = vadd.f32 %v1824, 1.0
        %v1828 = vadd.f32 %v1826, 1.0
        %v1829 = vrcp.pop %v1827
        %v1830 = vmul.f32 %v1827, %v1829
        %v1831 = vsub.f32 1.0, %v1830
        %v1832 = vmul.f32 %v1829, %v1831
        %v1833 = vadd.f32 %v1829, %v1832
        %vm1834 = vweird.f32 %v1827
        %vm1835 = vweird.f32 %v1829
        %vm1836 = vmor %vm1834, %vm1835
        %v1837 = vsel %vm1836, %v1829, %v1833
        %v1838 = vand.u32 2147483647, %v1827
        %vm1839 = vcmp.eq.f32.partialorder %v1838, 8.507059e+37
        %v1840 = vand.u32 %v1827, 2147483648
        %v1841 = vor.u32 1.1754944e-38, %v1840
        %v1842 = vsel %vm1839, %v1841, %v1837
        %v1843 = vmul.f32 1.0, %v1842
        %v1844 = vrcp.pop %v1828
        %v1845 = vmul.f32 %v1828, %v1844
        %v1846 = vsub.f32 1.0, %v1845
        %v1847 = vmul.f32 %v1844, %v1846
        %v1848 = vadd.f32 %v1844, %v1847
        %vm1849 = vweird.f32 %v1828
        %vm1850 = vweird.f32 %v1844
        %vm1851 = vmor %vm1849, %vm1850
        %v1852 = vsel %vm1851, %v1844, %v1848
        %v1853 = vand.u32 2147483647, %v1828
        %vm1854 = vcmp.eq.f32.partialorder %v1853, 8.507059e+37
        %v1855 = vand.u32 %v1828, 2147483648
        %v1856 = vor.u32 1.1754944e-38, %v1855
        %v1857 = vsel %vm1854, %v1856, %v1852
        %v1858 = vmul.f32 1.0, %v1857
        %1859 = vxpose.xlu0.b32.start [1/16] %v1843, 128
        %1860 = vxpose.xlu0.b32.cont [2/16] %v1858, 128
        %1861 = vxpose.xlu0.b32.cont [3/16] 0.0, 128
        %1862 = vxpose.xlu0.b32.cont [4/16] 0.0, 128
        %1863 = vxpose.xlu0.b32.cont [5/16] 0.0, 128
        %1864 = vxpose.xlu0.b32.cont [6/16] 0.0, 128
        %1865 = vxpose.xlu0.b32.cont [7/16] 0.0, 128
        %1866 = vxpose.xlu0.b32.cont [8/16] 0.0, 128
        %1867 = vxpose.xlu0.b32.cont [9/16] 0.0, 128
        %1868 = vxpose.xlu0.b32.cont [10/16] 0.0, 128
        %1869 = vxpose.xlu0.b32.cont [11/16] 0.0, 128
        %1870 = vxpose.xlu0.b32.cont [12/16] 0.0, 128
        %1871 = vxpose.xlu0.b32.cont [13/16] 0.0, 128
        %1872 = vxpose.xlu0.b32.cont [14/16] 0.0, 128
        %1873 = vxpose.xlu0.b32.cont [15/16] 0.0, 128
        %1874 = vxpose.xlu0.b32.end [16/16] 0.0, 128
        %v1875 = vpop.trf.xlu0
        %v1876 = vpop.trf.xlu0
        %v1877 = vpop.trf.xlu0
        %v1878 = vpop.trf.xlu0
        %v1879 = vpop.trf.xlu0
        %v1880 = vpop.trf.xlu0
        %v1881 = vpop.trf.xlu0
        %v1882 = vpop.trf.xlu0
        %v1883 = vpop.trf.xlu0
        %v1884 = vpop.trf.xlu0
        %v1885 = vpop.trf.xlu0
        %v1886 = vpop.trf.xlu0
        %v1887 = vpop.trf.xlu0
        %v1888 = vpop.trf.xlu0
        %v1889 = vpop.trf.xlu0
        %v1890 = vpop.trf.xlu0
        %vm1891 = vcmask 80896
        %v1893 = vsel %vm1891, %v1875, 0
        %v1896 = vsel %vm1891, %v1876, 0
        %v1899 = vsel %vm1891, %v1877, 0
        %v1902 = vsel %vm1891, %v1878, 0
        %v1904 = vsel %vm1712, %v471, 0
        %1906 = vmatpush.msra.mxu0 0.0
        %1907 = vmatpush.msra.mxu0 0.0
        %1908 = vmatpush.msra.mxu0 0.0
        %1909 = vmatpush.msra.mxu0 0.0
        %1910 = vmatpush.msra.mxu0 0.0
        %1911 = vmatpush.msra.mxu0 0.0
        %1912 = vmatpush.msra.mxu0 0.0
        %1913 = vmatpush.msra.mxu0 0.0
        %1914 = vmatpush.msra.mxu0 0.0
        %1915 = vmatpush.msra.mxu0 0.0
        %1916 = vmatpush.msra.mxu0 0.0
        %1917 = vmatpush.msra.mxu0 0.0
        %1918 = vmatpush.msra.mxu0 0.0
        %1919 = vmatpush.msra.mxu0 0.0
        %1920 = vmatpush.msra.mxu0 %v1904
        %1921 = vmatpush.msra.mxu0 %v470
        %1922 = vmatmul.f32.gmra.mxu0 %v1893
        %v1923 = vpop.f32.mrf.mxu0
        %v1924 = vadd.f32 0.0, %v1923
        %1925 = vmatmul.f32.gmra.mxu0 %v1896
        %v1926 = vpop.f32.mrf.mxu0
        %v1927 = vadd.f32 0.0, %v1926
        %1928 = vmatmul.f32.gmra.mxu0 %v1899
        %v1929 = vpop.f32.mrf.mxu0
        %v1930 = vadd.f32 0.0, %v1929
        %1931 = vmatmul.f32.gmra.mxu0 %v1902
        %v1932 = vpop.f32.mrf.mxu0
        %v1933 = vadd.f32 0.0, %v1932
        %1934 = vdwg.mxu0
        %v1939 = vrot.slane %v1924, 1
        %v1940 = vrot.slane %v1924, 2
        %v1941 = vrot.slane %v1924, 3
        %v1942 = vrot.slane %v1924, 4
        %v1943 = vrot.slane %v1924, 5
        %v1944 = vrot.slane %v1924, 6
        %v1945 = vrot.slane %v1924, 7
        %v1946 = vrot.slane %v1927, 1
        %v1947 = vrot.slane %v1927, 2
        %v1948 = vrot.slane %v1927, 3
        %v1949 = vrot.slane %v1927, 4
        %v1950 = vrot.slane %v1927, 5
        %v1951 = vrot.slane %v1927, 6
        %v1952 = vrot.slane %v1927, 7
        %v1953 = vrot.slane %v1930, 1
        %v1954 = vrot.slane %v1930, 2
        %v1955 = vrot.slane %v1930, 3
        %v1956 = vrot.slane %v1930, 4
        %v1957 = vrot.slane %v1930, 5
        %v1958 = vrot.slane %v1930, 6
        %v1959 = vrot.slane %v1930, 7
        %v1960 = vrot.slane %v1933, 1
        %v1961 = vrot.slane %v1933, 2
        %v1962 = vrot.slane %v1933, 3
        %v1963 = vrot.slane %v1933, 4
        %v1964 = vrot.slane %v1933, 5
        %v1965 = vrot.slane %v1933, 6
        %v1966 = vrot.slane %v1933, 7
        %v1967 = vperm.slane %v1924, 0
        %v1968 = vperm.slane %v1939, 0
        %v1969 = vperm.slane %v1940, 0
        %v1970 = vperm.slane %v1941, 0
        %v1971 = vperm.slane %v1942, 0
        %v1972 = vperm.slane %v1943, 0
        %v1973 = vperm.slane %v1944, 0
        %v1974 = vperm.slane %v1945, 0
        %v1975 = vperm.slane %v1927, 0
        %v1976 = vperm.slane %v1946, 0
        %v1977 = vperm.slane %v1947, 0
        %v1978 = vperm.slane %v1948, 0
        %v1979 = vperm.slane %v1949, 0
        %v1980 = vperm.slane %v1950, 0
        %v1981 = vperm.slane %v1951, 0
        %v1982 = vperm.slane %v1952, 0
        %v1983 = vperm.slane %v1930, 0
        %v1984 = vperm.slane %v1953, 0
        %v1985 = vperm.slane %v1954, 0
        %v1986 = vperm.slane %v1955, 0
        %v1987 = vperm.slane %v1956, 0
        %v1988 = vperm.slane %v1957, 0
        %v1989 = vperm.slane %v1958, 0
        %v1990 = vperm.slane %v1959, 0
        %v1991 = vperm.slane %v1933, 0
        %v1992 = vperm.slane %v1960, 0
        %v1993 = vperm.slane %v1961, 0
        %v1994 = vperm.slane %v1962, 0
        %v1995 = vperm.slane %v1963, 0
        %v1996 = vperm.slane %v1964, 0
        %v1997 = vperm.slane %v1965, 0
        %v1998 = vperm.slane %v1966, 0
        %v2031 = vmul.f32 %v438, %v1967
        %v2032 = vmul.f32 %v439, %v1968
        %v2033 = vmul.f32 %v440, %v1969
        %v2034 = vmul.f32 %v441, %v1970
        %v2035 = vmul.f32 %v442, %v1971
        %v2036 = vmul.f32 %v443, %v1972
        %v2037 = vmul.f32 %v444, %v1973
        %v2038 = vmul.f32 %v445, %v1974
        %v2039 = vmul.f32 %v446, %v1975
        %v2040 = vmul.f32 %v447, %v1976
        %v2041 = vmul.f32 %v448, %v1977
        %v2042 = vmul.f32 %v449, %v1978
        %v2043 = vmul.f32 %v450, %v1979
        %v2044 = vmul.f32 %v451, %v1980
        %v2045 = vmul.f32 %v452, %v1981
        %v2046 = vmul.f32 %v453, %v1982
        %v2047 = vmul.f32 %v454, %v1983
        %v2048 = vmul.f32 %v455, %v1984
        %v2049 = vmul.f32 %v456, %v1985
        %v2050 = vmul.f32 %v457, %v1986
        %v2051 = vmul.f32 %v458, %v1987
        %v2052 = vmul.f32 %v459, %v1988
        %v2053 = vmul.f32 %v460, %v1989
        %v2054 = vmul.f32 %v461, %v1990
        %v2055 = vmul.f32 %v462, %v1991
        %v2056 = vmul.f32 %v463, %v1992
        %v2057 = vmul.f32 %v464, %v1993
        %v2058 = vmul.f32 %v465, %v1994
        %v2059 = vmul.f32 %v466, %v1995
        %v2060 = vmul.f32 %v467, %v1996
        %v2061 = vmul.f32 %v468, %v1997
        %v2062 = vmul.f32 %v469, %v1998
        %v2063 = vld [vmem:[%s3] sm:$0xff]
        %v2064 = vld [vmem:[%s3 + $0x8] sm:$0xff]
        %v2065 = vld [vmem:[%s3 + $0x10] sm:$0xff]
        %v2066 = vld [vmem:[%s3 + $0x18] sm:$0xff]
        %v2067 = vld [vmem:[%s3 + $0x20] sm:$0xff]
        %v2068 = vld [vmem:[%s3 + $0x28] sm:$0xff]
        %v2069 = vld [vmem:[%s3 + $0x30] sm:$0x3]
        %v2071 = vsel %vm472, %v2031, 0
        %v2074 = vsel %vm472, %v2032, 0
        %v2077 = vsel %vm472, %v2033, 0
        %v2080 = vsel %vm472, %v2034, 0
        %v2083 = vsel %vm472, %v2035, 0
        %v2086 = vsel %vm472, %v2036, 0
        %v2089 = vsel %vm472, %v2037, 0
        %v2092 = vsel %vm472, %v2038, 0
        %v2095 = vsel %vm472, %v2039, 0
        %v2098 = vsel %vm472, %v2040, 0
        %v2101 = vsel %vm472, %v2041, 0
        %v2104 = vsel %vm472, %v2042, 0
        %v2107 = vsel %vm472, %v2043, 0
        %v2110 = vsel %vm472, %v2044, 0
        %v2113 = vsel %vm472, %v2045, 0
        %v2116 = vsel %vm472, %v2046, 0
        %v2119 = vsel %vm472, %v2047, 0
        %v2122 = vsel %vm472, %v2048, 0
        %v2125 = vsel %vm472, %v2049, 0
        %v2128 = vsel %vm472, %v2050, 0
        %v2131 = vsel %vm472, %v2051, 0
        %v2134 = vsel %vm472, %v2052, 0
        %v2137 = vsel %vm472, %v2053, 0
        %v2140 = vsel %vm472, %v2054, 0
        %v2143 = vsel %vm472, %v2055, 0
        %v2146 = vsel %vm472, %v2056, 0
        %v2149 = vsel %vm472, %v2057, 0
        %v2152 = vsel %vm472, %v2058, 0
        %v2155 = vsel %vm472, %v2059, 0
        %v2158 = vsel %vm472, %v2060, 0
        %v2161 = vsel %vm472, %v2061, 0
        %v2164 = vsel %vm472, %v2062, 0
        %v2167 = vsel %vm1712, %v2069, 0
        %2169 = vmatpush.msra.mxu0 0.0
        %2170 = vmatpush.msra.mxu0 0.0
        %2171 = vmatpush.msra.mxu0 0.0
        %2172 = vmatpush.msra.mxu0 0.0
        %2173 = vmatpush.msra.mxu0 0.0
        %2174 = vmatpush.msra.mxu0 0.0
        %2175 = vmatpush.msra.mxu0 0.0
        %2176 = vmatpush.msra.mxu0 0.0
        %2177 = vmatpush.msra.mxu0 0.0
        %2178 = vmatpush.msra.mxu0 %v2167
        %2179 = vmatpush.msra.mxu0 %v2068
        %2180 = vmatpush.msra.mxu0 %v2067
        %2181 = vmatpush.msra.mxu0 %v2066
        %2182 = vmatpush.msra.mxu0 %v2065
        %2183 = vmatpush.msra.mxu0 %v2064
        %2184 = vmatpush.msra.mxu0 %v2063
        %2185 = vmatmul.f32.gmra.mxu0 %v2071
        %v2186 = vpop.f32.mrf.mxu0
        %v2187 = vadd.f32 0.0, %v2186
        %2188 = vmatmul.f32.gmra.mxu0 %v2074
        %v2189 = vpop.f32.mrf.mxu0
        %v2190 = vadd.f32 0.0, %v2189
        %2191 = vmatmul.f32.gmra.mxu0 %v2077
        %v2192 = vpop.f32.mrf.mxu0
        %v2193 = vadd.f32 0.0, %v2192
        %2194 = vmatmul.f32.gmra.mxu0 %v2080
        %v2195 = vpop.f32.mrf.mxu0
        %v2196 = vadd.f32 0.0, %v2195
        %2197 = vmatmul.f32.gmra.mxu0 %v2083
        %v2198 = vpop.f32.mrf.mxu0
        %v2199 = vadd.f32 0.0, %v2198
        %2200 = vmatmul.f32.gmra.mxu0 %v2086
        %v2201 = vpop.f32.mrf.mxu0
        %v2202 = vadd.f32 0.0, %v2201
        %2203 = vmatmul.f32.gmra.mxu0 %v2089
        %v2204 = vpop.f32.mrf.mxu0
        %v2205 = vadd.f32 0.0, %v2204
        %2206 = vmatmul.f32.gmra.mxu0 %v2092
        %v2207 = vpop.f32.mrf.mxu0
        %v2208 = vadd.f32 0.0, %v2207
        %2209 = vmatmul.f32.gmra.mxu0 %v2095
        %v2210 = vpop.f32.mrf.mxu0
        %v2211 = vadd.f32 0.0, %v2210
        %2212 = vmatmul.f32.gmra.mxu0 %v2098
        %v2213 = vpop.f32.mrf.mxu0
        %v2214 = vadd.f32 0.0, %v2213
        %2215 = vmatmul.f32.gmra.mxu0 %v2101
        %v2216 = vpop.f32.mrf.mxu0
        %v2217 = vadd.f32 0.0, %v2216
        %2218 = vmatmul.f32.gmra.mxu0 %v2104
        %v2219 = vpop.f32.mrf.mxu0
        %v2220 = vadd.f32 0.0, %v2219
        %2221 = vmatmul.f32.gmra.mxu0 %v2107
        %v2222 = vpop.f32.mrf.mxu0
        %v2223 = vadd.f32 0.0, %v2222
        %2224 = vmatmul.f32.gmra.mxu0 %v2110
        %v2225 = vpop.f32.mrf.mxu0
        %v2226 = vadd.f32 0.0, %v2225
        %2227 = vmatmul.f32.gmra.mxu0 %v2113
        %v2228 = vpop.f32.mrf.mxu0
        %v2229 = vadd.f32 0.0, %v2228
        %2230 = vmatmul.f32.gmra.mxu0 %v2116
        %v2231 = vpop.f32.mrf.mxu0
        %v2232 = vadd.f32 0.0, %v2231
        %2233 = vmatmul.f32.gmra.mxu0 %v2119
        %v2234 = vpop.f32.mrf.mxu0
        %v2235 = vadd.f32 0.0, %v2234
        %2236 = vmatmul.f32.gmra.mxu0 %v2122
        %v2237 = vpop.f32.mrf.mxu0
        %v2238 = vadd.f32 0.0, %v2237
        %2239 = vmatmul.f32.gmra.mxu0 %v2125
        %v2240 = vpop.f32.mrf.mxu0
        %v2241 = vadd.f32 0.0, %v2240
        %2242 = vmatmul.f32.gmra.mxu0 %v2128
        %v2243 = vpop.f32.mrf.mxu0
        %v2244 = vadd.f32 0.0, %v2243
        %2245 = vmatmul.f32.gmra.mxu0 %v2131
        %v2246 = vpop.f32.mrf.mxu0
        %v2247 = vadd.f32 0.0, %v2246
        %2248 = vmatmul.f32.gmra.mxu0 %v2134
        %v2249 = vpop.f32.mrf.mxu0
        %v2250 = vadd.f32 0.0, %v2249
        %2251 = vmatmul.f32.gmra.mxu0 %v2137
        %v2252 = vpop.f32.mrf.mxu0
        %v2253 = vadd.f32 0.0, %v2252
        %2254 = vmatmul.f32.gmra.mxu0 %v2140
        %v2255 = vpop.f32.mrf.mxu0
        %v2256 = vadd.f32 0.0, %v2255
        %2257 = vmatmul.f32.gmra.mxu0 %v2143
        %v2258 = vpop.f32.mrf.mxu0
        %v2259 = vadd.f32 0.0, %v2258
        %2260 = vmatmul.f32.gmra.mxu0 %v2146
        %v2261 = vpop.f32.mrf.mxu0
        %v2262 = vadd.f32 0.0, %v2261
        %2263 = vmatmul.f32.gmra.mxu0 %v2149
        %v2264 = vpop.f32.mrf.mxu0
        %v2265 = vadd.f32 0.0, %v2264
        %2266 = vmatmul.f32.gmra.mxu0 %v2152
        %v2267 = vpop.f32.mrf.mxu0
        %v2268 = vadd.f32 0.0, %v2267
        %2269 = vmatmul.f32.gmra.mxu0 %v2155
        %v2270 = vpop.f32.mrf.mxu0
        %v2271 = vadd.f32 0.0, %v2270
        %2272 = vmatmul.f32.gmra.mxu0 %v2158
        %v2273 = vpop.f32.mrf.mxu0
        %v2274 = vadd.f32 0.0, %v2273
        %2275 = vmatmul.f32.gmra.mxu0 %v2161
        %v2276 = vpop.f32.mrf.mxu0
        %v2277 = vadd.f32 0.0, %v2276
        %2278 = vmatmul.f32.gmra.mxu0 %v2164
        %v2279 = vpop.f32.mrf.mxu0
        %v2280 = vadd.f32 0.0, %v2279
        %2281 = vdwg.mxu0
        %2282 = vst.msk [vmem:[%s437] sm:$0xff] %vm472, %v2187
        %2283 = vst.msk [vmem:[%s437 + $0x8] sm:$0xff] %vm472, %v2190
        %2284 = vst.msk [vmem:[%s437 + $0x10] sm:$0xff] %vm472, %v2193
        %2285 = vst.msk [vmem:[%s437 + $0x18] sm:$0xff] %vm472, %v2196
        %2286 = vst.msk [vmem:[%s437 + $0x20] sm:$0xff] %vm472, %v2199
        %2287 = vst.msk [vmem:[%s437 + $0x28] sm:$0xff] %vm472, %v2202
        %2288 = vst.msk [vmem:[%s437 + $0x30] sm:$0xff] %vm472, %v2205
        %2289 = vst.msk [vmem:[%s437 + $0x38] sm:$0xff] %vm472, %v2208
        %2290 = vst.msk [vmem:[%s437 + $0x40] sm:$0xff] %vm472, %v2211
        %2291 = vst.msk [vmem:[%s437 + $0x48] sm:$0xff] %vm472, %v2214
        %2292 = vst.msk [vmem:[%s437 + $0x50] sm:$0xff] %vm472, %v2217
        %2293 = vst.msk [vmem:[%s437 + $0x58] sm:$0xff] %vm472, %v2220
        %2294 = vst.msk [vmem:[%s437 + $0x60] sm:$0xff] %vm472, %v2223
        %2295 = vst.msk [vmem:[%s437 + $0x68] sm:$0xff] %vm472, %v2226
        %2296 = vst.msk [vmem:[%s437 + $0x70] sm:$0xff] %vm472, %v2229
        %2297 = vst.msk [vmem:[%s437 + $0x78] sm:$0xff] %vm472, %v2232
        %2298 = vst.msk [vmem:[%s437 + $0x80] sm:$0xff] %vm472, %v2235
        %2299 = vst.msk [vmem:[%s437 + $0x88] sm:$0xff] %vm472, %v2238
        %2300 = vst.msk [vmem:[%s437 + $0x90] sm:$0xff] %vm472, %v2241
        %2301 = vst.msk [vmem:[%s437 + $0x98] sm:$0xff] %vm472, %v2244
        %2302 = vst.msk [vmem:[%s437 + $0xa0] sm:$0xff] %vm472, %v2247
        %2303 = vst.msk [vmem:[%s437 + $0xa8] sm:$0xff] %vm472, %v2250
        %2304 = vst.msk [vmem:[%s437 + $0xb0] sm:$0xff] %vm472, %v2253
        %2305 = vst.msk [vmem:[%s437 + $0xb8] sm:$0xff] %vm472, %v2256
        %2306 = vst.msk [vmem:[%s437 + $0xc0] sm:$0xff] %vm472, %v2259
        %2307 = vst.msk [vmem:[%s437 + $0xc8] sm:$0xff] %vm472, %v2262
        %2308 = vst.msk [vmem:[%s437 + $0xd0] sm:$0xff] %vm472, %v2265
        %2309 = vst.msk [vmem:[%s437 + $0xd8] sm:$0xff] %vm472, %v2268
        %2310 = vst.msk [vmem:[%s437 + $0xe0] sm:$0xff] %vm472, %v2271
        %2311 = vst.msk [vmem:[%s437 + $0xe8] sm:$0xff] %vm472, %v2274
        %2312 = vst.msk [vmem:[%s437 + $0xf0] sm:$0xff] %vm472, %v2277
        %2313 = vst.msk [vmem:[%s437 + $0xf8] sm:$0xff] %vm472, %v2280
        %p2314 = scmp.lt.s32.totalorder %s26, 1
        %s2315 = scalar_select %p2314, %s26, 1
        %s2316 = smul.addr %s2315, 32
        %s2317 = smul.addr %s2316, 8
        %s2318 = scalar_lea.vmem %s9, %s2317
        // Predicated region
        $region81: #{tpu_custom_call.1} parent=55 // pred_check
          %p2319 = pneg %p238
        $region82: #{tpu_custom_call.1} parent=55 // pred_check_branch
          %2321 = sbr.rel (%p2319) target = $region84
        $region83: #{tpu_custom_call.1} parent=55 // pred_region
          _
        $region84: #{tpu_custom_call.1} parent=55 // pred_fallthru
          _
      $region56: #{tpu_custom_call.1} parent=5 // pred_fallthru
        _
      %p2322 = scmp.le.s32.totalorder 2, %s21
      // Predicated region
      $region85: #{tpu_custom_call.1} parent=5 // pred_check
        %p2323 = pneg %p2322
      $region86: #{tpu_custom_call.1} parent=5 // pred_check_branch
        %2325 = sbr.rel (%p2323) target = $region88
      $region87: #{tpu_custom_call.1} parent=5 // pred_region
        %s2326 = ssub.s32 %s21, 2
        // Predicated region
        $region89: #{tpu_custom_call.1} parent=87 // pred_check
          %p2327 = pneg %p244
        $region90: #{tpu_custom_call.1} parent=87 // pred_check_branch
          %2329 = sbr.rel (%p2327) target = $region92
        $region91: #{tpu_custom_call.1} parent=87 // pred_region
          %p2330 = scmp.lt.s32.totalorder %s27, 1
          %s2331 = scalar_select %p2330, %s27, 1
          %s2332 = smul.addr %s2331, 32
          %s2333 = smul.addr %s2332, 8
          %s2334 = scalar_lea.vmem %s9, %s2333
        $region92: #{tpu_custom_call.1} parent=87 // pred_fallthru
          _
      $region88: #{tpu_custom_call.1} parent=5 // pred_fallthru
        _
    $region6: #{tpu_custom_call.1} parent=1 // loop_footer
      %s25 = sadd.s32 1, %s21
    $region7: #{tpu_custom_call.1} parent=1 // loop_footer_branch
      %20 = sbr.rel target = $region3
    $region8: #{tpu_custom_call.1} parent=1 // loop_exit
      _
    %2335 = vsyncpa [#allocation3], 1
    %s2336 = scalar_lea.sflag [#allocation3], 1
    %2337 = vsyncpa %s2336, 1
    %2338 = vsyncpa [#allocation5], 1
    %2339 = vsyncpa [#allocation8], 1
    %2340 = vsyncpa [#allocation11], 1

</llo_original>
